<compile_context>
chip_gen: v7x
topology: tpu7x:2x2x1
jax: 0.10.0
libtpu: 0.0.40
codegen_flags: <defaults>
</compile_context>

<pallas_src>
import jax
import jax.numpy as jnp
from jax.experimental import pallas as pl
from jax.experimental.pallas import tpu as pltpu

IN_FEATURES = 28 * 28   # 784
HIDDEN = 512
OUT_FEATURES = 10
OUT_PADDED = 128        # lane-dense output width


def mlp_kernel(x_ref, w1_ref, b1_ref, w2_ref, b2_ref, w3_ref, b3_ref, o_ref):
    # One batch tile resident in VMEM; three fused matmul+bias(+ReLU) stages.
    x = x_ref[...]                                                           # bf16 [TB, 784]
    h = jnp.dot(x, w1_ref[...], preferred_element_type=jnp.float32) + b1_ref[...]
    h = jnp.maximum(h, 0.0).astype(jnp.bfloat16)                             # ReLU, back to bf16
    h = jnp.dot(h, w2_ref[...], preferred_element_type=jnp.float32) + b2_ref[...]
    h = jnp.maximum(h, 0.0).astype(jnp.bfloat16)                             # ReLU, back to bf16
    # Last layer padded to 128 output lanes -> unmasked vst, lane-dense DMA.
    o_ref[...] = (jnp.dot(h, w3_ref[...], preferred_element_type=jnp.float32)
                  + b3_ref[...]).astype(o_ref.dtype)                         # f32 [TB, 128]


def _pick_batch_tile(B):
    # >= 2 grid steps once B > 8 (v7x megacore + pipeline overlap); TB multiple of 8;
    # capped at 512 so TB*784 bf16 (double-buffered) stays tiny vs any scoped-VMEM limit.
    if B <= 8:
        return B
    cap = max(8, min(512, B // 2))
    for tb in (512, 256, 128, 64, 32, 16, 8):
        if tb <= cap and B % tb == 0:
            return tb
    return B   # odd batch sizes: single full-extent block


def _const_spec(shape):
    # Constant-index (VMEM-resident) block; request single buffering since it never re-DMAs.
    idx = lambda i: (0,) * len(shape)
    try:
        return pl.BlockSpec(shape, idx, pipeline_mode=pl.Buffered(1))
    except TypeError:
        return pl.BlockSpec(shape, idx)


def neural_network_forward(x, w1, b1, w2, b2, w3, b3):
    # nn.Flatten: collapse all dims after batch; single cast to the matmul dtype (bf16).
    B = x.shape[0]
    x2 = x.reshape(B, -1).astype(jnp.bfloat16)
    assert x2.shape[1] == w1.shape[0]

    # Weights in bf16 for the MXU; biases stay f32 (bias-add/ReLU done in f32).
    w1b = w1.astype(jnp.bfloat16)
    w2b = w2.astype(jnp.bfloat16)
    b1f = b1.astype(jnp.float32)
    b2f = b2.astype(jnp.float32)
    # Zero-pad the last layer N=10 -> 128 for lane-dense output.
    w3p = jnp.pad(w3, ((0, 0), (0, OUT_PADDED - w3.shape[1]))).astype(jnp.bfloat16)
    b3p = jnp.pad(b3, ((0, 0), (0, OUT_PADDED - b3.shape[1]))).astype(jnp.float32)

    TB = _pick_batch_tile(B)
    grid = (B // TB,)

    K1 = w1.shape[0]
    cost = pl.CostEstimate(
        flops=2 * B * (K1 * HIDDEN + HIDDEN * HIDDEN + HIDDEN * OUT_PADDED),
        transcendentals=0,
        bytes_accessed=(B * K1 * 2                       # x (bf16)
                        + (K1 * HIDDEN + HIDDEN * HIDDEN + HIDDEN * OUT_PADDED) * 2  # W (bf16)
                        + (HIDDEN + HIDDEN + OUT_PADDED) * 4                          # biases
                        + B * OUT_PADDED * 4),           # logits out (f32)
    )

    logits_padded = pl.pallas_call(
        mlp_kernel,
        out_shape=jax.ShapeDtypeStruct((B, OUT_PADDED), jnp.float32),
        grid=grid,
        in_specs=[
            pl.BlockSpec((TB, K1), lambda i: (i, 0)),    # x tile marches over the batch
            _const_spec(w1b.shape),                      # weights/biases VMEM-resident
            _const_spec(b1f.shape),
            _const_spec(w2b.shape),
            _const_spec(b2f.shape),
            _const_spec(w3p.shape),
            _const_spec(b3p.shape),
        ],
        out_specs=pl.BlockSpec((TB, OUT_PADDED), lambda i: (i, 0)),
        compiler_params=pltpu.CompilerParams(
            dimension_semantics=("parallel",),           # independent batch tiles
            vmem_limit_bytes=32 << 20,
        ),
        cost_estimate=cost,
    )(x2, w1b, b1f, w2b, b2f, w3p, b3p)

    return logits_padded[:, :OUT_FEATURES]


def init_params(key):
    # Deterministic PyTorch-style init: U(-1/sqrt(fan_in), 1/sqrt(fan_in)).
    ks = jax.random.split(key, 6)

    def linear(kw, kb, fan_in, fan_out):
        lim = 1.0 / jnp.sqrt(jnp.float32(fan_in))
        w = jax.random.uniform(kw, (fan_in, fan_out), jnp.float32, -lim, lim)
        b = jax.random.uniform(kb, (1, fan_out), jnp.float32, -lim, lim)
        return w, b

    w1, b1 = linear(ks[0], ks[1], IN_FEATURES, HIDDEN)
    w2, b2 = linear(ks[2], ks[3], HIDDEN, HIDDEN)
    w3, b3 = linear(ks[4], ks[5], HIDDEN, OUT_FEATURES)
    return w1, b1, w2, b2, w3, b3


def ref_forward(x, w1, b1, w2, b2, w3, b3):
    # Reference uses matching bf16 matmul precision (f32 accumulate) for a tight comparison.
    x2 = x.reshape(x.shape[0], -1).astype(jnp.bfloat16)
    h = jnp.dot(x2, w1.astype(jnp.bfloat16), preferred_element_type=jnp.float32) + b1
    h = jnp.maximum(h, 0.0).astype(jnp.bfloat16)
    h = jnp.dot(h, w2.astype(jnp.bfloat16), preferred_element_type=jnp.float32) + b2
    h = jnp.maximum(h, 0.0).astype(jnp.bfloat16)
    return jnp.dot(h, w3.astype(jnp.bfloat16), preferred_element_type=jnp.float32) + b3


if __name__ == "__main__":
    key = jax.random.PRNGKey(0)
    kx, kp = jax.random.split(key)

    B = 16                               # small batch of 28x28 "images"
    x = jax.random.uniform(kx, (B, 28, 28), jnp.float32)
    params = init_params(kp)

    out = neural_network_forward(x, *params)
    jax.block_until_ready(out)

    # sanity: shape and agreement with a precision-matched pure-JAX reference
    ref = ref_forward(x, *params)
    assert out.shape == (B, OUT_FEATURES)
    assert jnp.allclose(out, ref, rtol=2e-2, atol=2e-2), "mismatch vs reference"

    print("KERNEL_OK")
</pallas_src>

<mosaic_0001>
module attributes {stable_mosaic.version = 11 : i64} {
  func.func @mlp_kernel(%arg0: i32, %arg1: memref<8x784xbf16, #tpu.memory_space<vmem>>, %arg2: memref<784x512xbf16, #tpu.memory_space<vmem>>, %arg3: memref<1x512xf32, #tpu.memory_space<vmem>>, %arg4: memref<512x512xbf16, #tpu.memory_space<vmem>>, %arg5: memref<1x512xf32, #tpu.memory_space<vmem>>, %arg6: memref<512x128xbf16, #tpu.memory_space<vmem>>, %arg7: memref<1x128xf32, #tpu.memory_space<vmem>>, %arg8: memref<8x128xf32, #tpu.memory_space<vmem>>) attributes {dimension_semantics = [#tpu.dimension_semantics<parallel>], iteration_bounds = array<i64: 2>, scalar_prefetch = 0 : i64, scratch_operands = 0 : i64, tpu.core_type = #tpu.core_type<tc>, window_params = [{transform_indices = @transform_0, window_bounds = array<i64: 8, 784>}, {pipeline_mode = #tpu.pipeline_mode<synchronous>, transform_indices = @transform_1, window_bounds = array<i64: 784, 512>}, {pipeline_mode = #tpu.pipeline_mode<synchronous>, transform_indices = @transform_2, window_bounds = array<i64: 1, 512>}, {pipeline_mode = #tpu.pipeline_mode<synchronous>, transform_indices = @transform_3, window_bounds = array<i64: 512, 512>}, {pipeline_mode = #tpu.pipeline_mode<synchronous>, transform_indices = @transform_4, window_bounds = array<i64: 1, 512>}, {pipeline_mode = #tpu.pipeline_mode<synchronous>, transform_indices = @transform_5, window_bounds = array<i64: 512, 128>}, {pipeline_mode = #tpu.pipeline_mode<synchronous>, transform_indices = @transform_6, window_bounds = array<i64: 1, 128>}, {transform_indices = @transform_7, window_bounds = array<i64: 8, 128>}]} {
    %c0 = arith.constant 0 : index
    %c0_0 = arith.constant 0 : index
    %0 = vector.load %arg1[%c0, %c0_0] : memref<8x784xbf16, #tpu.memory_space<vmem>>, vector<8x784xbf16>
    %c0_1 = arith.constant 0 : index
    %c0_2 = arith.constant 0 : index
    %1 = vector.load %arg2[%c0_1, %c0_2] : memref<784x512xbf16, #tpu.memory_space<vmem>>, vector<784x512xbf16>
    %cst = arith.constant dense<0.000000e+00> : vector<8x512xf32>
    %2 = tpu.matmul %0, %1, %cst {dimension_numbers = #tpu.dot_dimension_numbers<[1], [0], [0], [1], [0, 0, 1, 1], [], []>} : vector<8x784xbf16>, vector<784x512xbf16>, vector<8x512xf32> -> vector<8x512xf32>
    %c0_3 = arith.constant 0 : index
    %c0_4 = arith.constant 0 : index
    %3 = vector.load %arg3[%c0_3, %c0_4] : memref<1x512xf32, #tpu.memory_space<vmem>>, vector<1x512xf32>
    %4 = vector.broadcast %3 : vector<1x512xf32> to vector<8x512xf32>
    %5 = arith.addf %2, %4 : vector<8x512xf32>
    %cst_5 = arith.constant 0.000000e+00 : f32
    %6 = vector.broadcast %cst_5 : f32 to vector<8x512xf32>
    %7 = arith.maximumf %5, %6 : vector<8x512xf32>
    %8 = arith.truncf %7 : vector<8x512xf32> to vector<8x512xbf16>
    %c0_6 = arith.constant 0 : index
    %c0_7 = arith.constant 0 : index
    %9 = vector.load %arg4[%c0_6, %c0_7] : memref<512x512xbf16, #tpu.memory_space<vmem>>, vector<512x512xbf16>
    %cst_8 = arith.constant dense<0.000000e+00> : vector<8x512xf32>
    %10 = tpu.matmul %8, %9, %cst_8 {dimension_numbers = #tpu.dot_dimension_numbers<[1], [0], [0], [1], [0, 0, 1, 1], [], []>} : vector<8x512xbf16>, vector<512x512xbf16>, vector<8x512xf32> -> vector<8x512xf32>
    %c0_9 = arith.constant 0 : index
    %c0_10 = arith.constant 0 : index
    %11 = vector.load %arg5[%c0_9, %c0_10] : memref<1x512xf32, #tpu.memory_space<vmem>>, vector<1x512xf32>
    %12 = vector.broadcast %11 : vector<1x512xf32> to vector<8x512xf32>
    %13 = arith.addf %10, %12 : vector<8x512xf32>
    %cst_11 = arith.constant 0.000000e+00 : f32
    %14 = vector.broadcast %cst_11 : f32 to vector<8x512xf32>
    %15 = arith.maximumf %13, %14 : vector<8x512xf32>
    %16 = arith.truncf %15 : vector<8x512xf32> to vector<8x512xbf16>
    %c0_12 = arith.constant 0 : index
    %c0_13 = arith.constant 0 : index
    %17 = vector.load %arg6[%c0_12, %c0_13] : memref<512x128xbf16, #tpu.memory_space<vmem>>, vector<512x128xbf16>
    %cst_14 = arith.constant dense<0.000000e+00> : vector<8x128xf32>
    %18 = tpu.matmul %16, %17, %cst_14 {dimension_numbers = #tpu.dot_dimension_numbers<[1], [0], [0], [1], [0, 0, 1, 1], [], []>} : vector<8x512xbf16>, vector<512x128xbf16>, vector<8x128xf32> -> vector<8x128xf32>
    %c0_15 = arith.constant 0 : index
    %c0_16 = arith.constant 0 : index
    %19 = vector.load %arg7[%c0_15, %c0_16] : memref<1x128xf32, #tpu.memory_space<vmem>>, vector<1x128xf32>
    %20 = vector.broadcast %19 : vector<1x128xf32> to vector<8x128xf32>
    %21 = arith.addf %18, %20 : vector<8x128xf32>
    %c0_17 = arith.constant 0 : index
    %c0_18 = arith.constant 0 : index
    %22 = vector.load %arg8[%c0_17, %c0_18] : memref<8x128xf32, #tpu.memory_space<vmem>>, vector<8x128xf32>
    tpu.vector_store %arg8[%c0_17, %c0_18], %21 {strides = array<i32>} : memref<8x128xf32, #tpu.memory_space<vmem>>, vector<8x128xf32>,
    return
  }
  func.func @transform_0(%arg0: i32) -> (i32, i32) {
    %c0_i32 = arith.constant 0 : i32
    %c0_i32_0 = arith.constant 0 : i32
    return %arg0, %c0_i32 : i32, i32
  }
  func.func @transform_1(%arg0: i32) -> (i32, i32) {
    %c0_i32 = arith.constant 0 : i32
    %c0_i32_0 = arith.constant 0 : i32
    %c0_i32_1 = arith.constant 0 : i32
    return %c0_i32, %c0_i32_0 : i32, i32
  }
  func.func @transform_2(%arg0: i32) -> (i32, i32) {
    %c0_i32 = arith.constant 0 : i32
    %c0_i32_0 = arith.constant 0 : i32
    %c0_i32_1 = arith.constant 0 : i32
    return %c0_i32, %c0_i32_0 : i32, i32
  }
  func.func @transform_3(%arg0: i32) -> (i32, i32) {
    %c0_i32 = arith.constant 0 : i32
    %c0_i32_0 = arith.constant 0 : i32
    %c0_i32_1 = arith.constant 0 : i32
    return %c0_i32, %c0_i32_0 : i32, i32
  }
  func.func @transform_4(%arg0: i32) -> (i32, i32) {
    %c0_i32 = arith.constant 0 : i32
    %c0_i32_0 = arith.constant 0 : i32
    %c0_i32_1 = arith.constant 0 : i32
    return %c0_i32, %c0_i32_0 : i32, i32
  }
  func.func @transform_5(%arg0: i32) -> (i32, i32) {
    %c0_i32 = arith.constant 0 : i32
    %c0_i32_0 = arith.constant 0 : i32
    %c0_i32_1 = arith.constant 0 : i32
    return %c0_i32, %c0_i32_0 : i32, i32
  }
  func.func @transform_6(%arg0: i32) -> (i32, i32) {
    %c0_i32 = arith.constant 0 : i32
    %c0_i32_0 = arith.constant 0 : i32
    %c0_i32_1 = arith.constant 0 : i32
    return %c0_i32, %c0_i32_0 : i32, i32
  }
  func.func @transform_7(%arg0: i32) -> (i32, i32) {
    %c0_i32 = arith.constant 0 : i32
    %c0_i32_0 = arith.constant 0 : i32
    return %arg0, %c0_i32 : i32, i32
  }
}

</mosaic_0001>

<llo_original>
// kernel: tpu_custom_call.1
$region0: #{tpu_custom_call.1}
  #allocation0 [shape = 'u32[]', space=smem, size = 0x4, offset = 0x4, fixed_abs, tag = 'smem constant byte address 0x4 - core index']
  #allocation1 [shape = 'u32[144,128]{1,0:T(1,128)}', space=vmem, size = 0x12000, scoped, tag = 'internal scratch']
  %s0 = inlined_call_operand.hbm [shape: bf16[16,784], index: 0, kind: input, shape index: {}]
  %s1 = inlined_call_operand.hbm [shape: bf16[784,512], index: 1, kind: input, shape index: {}]
  %s2 = inlined_call_operand.vmem [shape: f32[1,512], index: 2, kind: input, shape index: {}]
  %s3 = inlined_call_operand.hbm [shape: bf16[512,512], index: 3, kind: input, shape index: {}]
  %s4 = inlined_call_operand.vmem [shape: f32[1,512], index: 4, kind: input, shape index: {}]
  %s5 = inlined_call_operand.hbm [shape: bf16[512,128], index: 5, kind: input, shape index: {}]
  %s6 = inlined_call_operand.vmem [shape: f32[1,128], index: 6, kind: input, shape index: {}]
  %s7 = inlined_call_operand.hbm [shape: f32[16,128], index: 7, kind: output, shape index: {}]
  %s8 = sld [smem:[#allocation0]]
  $region77: #{tpu_custom_call.1} parent=0
    _
  %s10 = ssub.s32 1, %s8
  %s11 = scalar_select 0, %s10, %s8
  $region1: #{tpu_custom_call.1} parent=0
    #allocation2 [shape = 'u8[28672]{0}', space=vmem, size = 0x7000, scoped, tag = 'input window, operand 0']
    #allocation3 [shape = 's32[2]{0}', space=sflag, size = 0x8, scoped, tag = 'scoped memory for tpu_custom_call.1']
    #allocation4 [shape = 's32[2]{0}', space=sflag, size = 0x8, scoped, tag = 'scoped memory for tpu_custom_call.1']
    #allocation5 [shape = 'u8[802816]{0}', space=vmem, size = 0xc4000, scoped, tag = 'input window, operand 1, single buffered']
    #allocation6 [shape = 's32[1]{0}', space=sflag, size = 0x4, scoped, tag = 'scoped memory for tpu_custom_call.1']
    #allocation7 [shape = 'u8[524288]{0}', space=vmem, size = 0x80000, scoped, tag = 'input window, operand 3, single buffered']
    #allocation8 [shape = 'u8[131072]{0}', space=vmem, size = 0x20000, scoped, tag = 'input window, operand 5, single buffered']
    #allocation9 [shape = 's32[1]{0}', space=sflag, size = 0x4, scoped, tag = 'scoped memory for tpu_custom_call.1']
    #allocation10 [shape = 'u8[8192]{0}', space=vmem, size = 0x2000, scoped, tag = 'output window, operand 0']
    %12 = vsyncpa [#allocation3], 0
    %s13 = scalar_lea.sflag [#allocation3], 1
    %14 = vsyncpa %s13, 0
    %15 = vsyncpa [#allocation6], 0
    %16 = vsyncpa [#allocation9], 0
    %17 = vsyncpa [#allocation4], 0
    %s18 = scalar_lea.sflag [#allocation4], 1
    %19 = vsyncpa %s18, 0
    loop: start=0, step=1, limit=4
    $region2: #{tpu_custom_call.1} parent=1 // loop_pre_header
      _
    $region3: #{tpu_custom_call.1} parent=1 // loop_header
      %s21 = sphi 0, %s25
      %p22 = scmp.ge.s32.totalorder %s21, 4
      %s31 = sphi 0, %s33
      %s34 = sphi 0, %s31
      %s35 = sphi 0, %s34
      %s51 = sphi 0, %s35
      %s55 = sphi 0, %s55
      %s57 = sphi 0, %s55
      %s58 = sphi 0, %s57
      %s72 = sphi 0, %s58
      %s76 = sphi 0, %s76
      %s78 = sphi 0, %s76
      %s79 = sphi 0, %s78
      %s93 = sphi 0, %s79
      %s97 = sphi 0, %s97
      %s99 = sphi 0, %s97
      %s100 = sphi 0, %s99
      %s114 = sphi 0, %s100
      %s118 = sphi 0, %s118
      %s120 = sphi 0, %s118
      %s121 = sphi 0, %s120
      %s135 = sphi 0, %s121
      %s139 = sphi 0, %s139
      %s141 = sphi 0, %s139
      %s142 = sphi 0, %s141
      %s156 = sphi 0, %s142
      %s160 = sphi 0, %s160
      %s162 = sphi 0, %s160
      %s163 = sphi 0, %s162
      %s177 = sphi 0, %s163
      %s183 = sphi 0, %s185
      %s186 = sphi 0, %s183
      %s187 = sphi 0, %s186
      %s203 = sphi 0, %s187
    $region4: #{tpu_custom_call.1} parent=1 // loop_header_branch
      %24 = sbr.rel (%p22) target = $region8
    $region5: #{tpu_custom_call.1} parent=1 // loop_body
      %s26 = ssub.s32 %s21, 1
      %s27 = ssub.s32 %s21, 2
      %s28 = sadd.s32 %s21, 1
      %s29 = ssub.s32 %s21, %s28
      %p30 = scmp.eq.s32.totalorder %s29, 0
      %s32 = sadd.s32 %s31, 1
      %s33 = scalar_select %p30, %s31, %s32
      %p36 = pneg %p30
      %p37 = scmp.eq.s32.totalorder %s21, 1
      %p38 = por %p36, %p37
      %p39 = scmp.ne.s32.totalorder %s31, %s34
      %p40 = scmp.eq.s32.totalorder %s21, 0
      %p41 = por %p39, %p40
      %p42 = scmp.ne.s32.totalorder %s31, %s34
      %p43 = scmp.eq.s32.totalorder %s26, 1
      %p44 = por %p42, %p43
      %p45 = scmp.ne.s32.totalorder %s34, %s35
      %p46 = scmp.eq.s32.totalorder %s26, 0
      %p47 = por %p45, %p46
      %p48 = scmp.ne.s32.totalorder %s34, %s35
      %p49 = scmp.eq.s32.totalorder %s27, 1
      %p50 = por %p48, %p49
      %p52 = scmp.ne.s32.totalorder %s35, %s51
      %p53 = scmp.eq.s32.totalorder %s27, 0
      %p54 = por %p52, %p53
      %s56 = sadd.s32 %s55, 1
      %p59 = scmp.eq.s32.totalorder %s21, 1
      %p60 = scmp.ne.s32.totalorder %s55, %s57
      %p61 = scmp.eq.s32.totalorder %s21, 0
      %p62 = por %p60, %p61
      %p63 = scmp.ne.s32.totalorder %s55, %s57
      %p64 = scmp.eq.s32.totalorder %s26, 1
      %p65 = por %p63, %p64
      %p66 = scmp.ne.s32.totalorder %s57, %s58
      %p67 = scmp.eq.s32.totalorder %s26, 0
      %p68 = por %p66, %p67
      %p69 = scmp.ne.s32.totalorder %s57, %s58
      %p70 = scmp.eq.s32.totalorder %s27, 1
      %p71 = por %p69, %p70
      %p73 = scmp.ne.s32.totalorder %s58, %s72
      %p74 = scmp.eq.s32.totalorder %s27, 0
      %p75 = por %p73, %p74
      %s77 = sadd.s32 %s76, 1
      %p80 = scmp.eq.s32.totalorder %s21, 1
      %p81 = scmp.ne.s32.totalorder %s76, %s78
      %p82 = scmp.eq.s32.totalorder %s21, 0
      %p83 = por %p81, %p82
      %p84 = scmp.ne.s32.totalorder %s76, %s78
      %p85 = scmp.eq.s32.totalorder %s26, 1
      %p86 = por %p84, %p85
      %p87 = scmp.ne.s32.totalorder %s78, %s79
      %p88 = scmp.eq.s32.totalorder %s26, 0
      %p89 = por %p87, %p88
      %p90 = scmp.ne.s32.totalorder %s78, %s79
      %p91 = scmp.eq.s32.totalorder %s27, 1
      %p92 = por %p90, %p91
      %p94 = scmp.ne.s32.totalorder %s79, %s93
      %p95 = scmp.eq.s32.totalorder %s27, 0
      %p96 = por %p94, %p95
      %s98 = sadd.s32 %s97, 1
      %p101 = scmp.eq.s32.totalorder %s21, 1
      %p102 = scmp.ne.s32.totalorder %s97, %s99
      %p103 = scmp.eq.s32.totalorder %s21, 0
      %p104 = por %p102, %p103
      %p105 = scmp.ne.s32.totalorder %s97, %s99
      %p106 = scmp.eq.s32.totalorder %s26, 1
      %p107 = por %p105, %p106
      %p108 = scmp.ne.s32.totalorder %s99, %s100
      %p109 = scmp.eq.s32.totalorder %s26, 0
      %p110 = por %p108, %p109
      %p111 = scmp.ne.s32.totalorder %s99, %s100
      %p112 = scmp.eq.s32.totalorder %s27, 1
      %p113 = por %p111, %p112
      %p115 = scmp.ne.s32.totalorder %s100, %s114
      %p116 = scmp.eq.s32.totalorder %s27, 0
      %p117 = por %p115, %p116
      %s119 = sadd.s32 %s118, 1
      %p122 = scmp.eq.s32.totalorder %s21, 1
      %p123 = scmp.ne.s32.totalorder %s118, %s120
      %p124 = scmp.eq.s32.totalorder %s21, 0
      %p125 = por %p123, %p124
      %p126 = scmp.ne.s32.totalorder %s118, %s120
      %p127 = scmp.eq.s32.totalorder %s26, 1
      %p128 = por %p126, %p127
      %p129 = scmp.ne.s32.totalorder %s120, %s121
      %p130 = scmp.eq.s32.totalorder %s26, 0
      %p131 = por %p129, %p130
      %p132 = scmp.ne.s32.totalorder %s120, %s121
      %p133 = scmp.eq.s32.totalorder %s27, 1
      %p134 = por %p132, %p133
      %p136 = scmp.ne.s32.totalorder %s121, %s135
      %p137 = scmp.eq.s32.totalorder %s27, 0
      %p138 = por %p136, %p137
      %s140 = sadd.s32 %s139, 1
      %p143 = scmp.eq.s32.totalorder %s21, 1
      %p144 = scmp.ne.s32.totalorder %s139, %s141
      %p145 = scmp.eq.s32.totalorder %s21, 0
      %p146 = por %p144, %p145
      %p147 = scmp.ne.s32.totalorder %s139, %s141
      %p148 = scmp.eq.s32.totalorder %s26, 1
      %p149 = por %p147, %p148
      %p150 = scmp.ne.s32.totalorder %s141, %s142
      %p151 = scmp.eq.s32.totalorder %s26, 0
      %p152 = por %p150, %p151
      %p153 = scmp.ne.s32.totalorder %s141, %s142
      %p154 = scmp.eq.s32.totalorder %s27, 1
      %p155 = por %p153, %p154
      %p157 = scmp.ne.s32.totalorder %s142, %s156
      %p158 = scmp.eq.s32.totalorder %s27, 0
      %p159 = por %p157, %p158
      %s161 = sadd.s32 %s160, 1
      %p164 = scmp.eq.s32.totalorder %s21, 1
      %p165 = scmp.ne.s32.totalorder %s160, %s162
      %p166 = scmp.eq.s32.totalorder %s21, 0
      %p167 = por %p165, %p166
      %p168 = scmp.ne.s32.totalorder %s160, %s162
      %p169 = scmp.eq.s32.totalorder %s26, 1
      %p170 = por %p168, %p169
      %p171 = scmp.ne.s32.totalorder %s162, %s163
      %p172 = scmp.eq.s32.totalorder %s26, 0
      %p173 = por %p171, %p172
      %p174 = scmp.ne.s32.totalorder %s162, %s163
      %p175 = scmp.eq.s32.totalorder %s27, 1
      %p176 = por %p174, %p175
      %p178 = scmp.ne.s32.totalorder %s163, %s177
      %p179 = scmp.eq.s32.totalorder %s27, 0
      %p180 = por %p178, %p179
      %s181 = ssub.s32 %s21, %s28
      %p182 = scmp.eq.s32.totalorder %s181, 0
      %s184 = sadd.s32 %s183, 1
      %s185 = scalar_select %p182, %s183, %s184
      %p188 = pneg %p182
      %p189 = scmp.eq.s32.totalorder %s21, 1
      %p190 = por %p188, %p189
      %p191 = scmp.ne.s32.totalorder %s183, %s186
      %p192 = scmp.eq.s32.totalorder %s21, 0
      %p193 = por %p191, %p192
      %p194 = scmp.ne.s32.totalorder %s183, %s186
      %p195 = scmp.eq.s32.totalorder %s26, 1
      %p196 = por %p194, %p195
      %p197 = scmp.ne.s32.totalorder %s186, %s187
      %p198 = scmp.eq.s32.totalorder %s26, 0
      %p199 = por %p197, %p198
      %p200 = scmp.ne.s32.totalorder %s186, %s187
      %p201 = scmp.eq.s32.totalorder %s27, 1
      %p202 = por %p200, %p201
      %p204 = scmp.ne.s32.totalorder %s187, %s203
      %p205 = scmp.eq.s32.totalorder %s27, 0
      %p206 = por %p204, %p205
      %p207 = scmp.le.s32.totalorder 1, %s21
      %p208 = scmp.lt.s32.totalorder %s21, 3
      %p209 = pnand %p207, %p208
      %p210 = pneg %p209
      // Predicated region
      $region9: #{tpu_custom_call.1} parent=5 // pred_check
        _
      $region10: #{tpu_custom_call.1} parent=5 // pred_check_branch
        %212 = sbr.rel (%p209) target = $region12
      $region11: #{tpu_custom_call.1} parent=5 // pred_region
        %s213 = ssub.s32 %s21, 1
        // Predicated region
        $region13: #{tpu_custom_call.1} parent=11 // pred_check
          %p214 = pneg %p68
        $region14: #{tpu_custom_call.1} parent=11 // pred_check_branch
          %216 = sbr.rel (%p214) target = $region16
        $region15: #{tpu_custom_call.1} parent=11 // pred_region
          %s218 = ssub.s32 25088, 25088
          %219 = vsyncadd [#allocation6], %s218
          %s220 = sshll.u32 [#allocation5], 4
          %s221 = int_to_ptr.vmem [resolvable:$true] %s220
          %226 = dma.hbm_to_vmem [thread:$0]  %s1, 25088, %s221, [#allocation6], 256, 256, 16
        $region16: #{tpu_custom_call.1} parent=11 // pred_fallthru
          _
        // Predicated region
        $region17: #{tpu_custom_call.1} parent=11 // pred_check
          %p227 = pneg %p89
        $region18: #{tpu_custom_call.1} parent=11 // pred_check_branch
          %229 = sbr.rel (%p227) target = $region20
        $region19: #{tpu_custom_call.1} parent=11 // pred_region
          _
        $region20: #{tpu_custom_call.1} parent=11 // pred_fallthru
          _
        // Predicated region
        $region21: #{tpu_custom_call.1} parent=11 // pred_check
          %p230 = pneg %p110
        $region22: #{tpu_custom_call.1} parent=11 // pred_check_branch
          %232 = sbr.rel (%p230) target = $region24
        $region23: #{tpu_custom_call.1} parent=11 // pred_region
          %s234 = ssub.s32 16384, 16384
          %235 = vsyncadd [#allocation6], %s234
          %s236 = sshll.u32 [#allocation7], 4
          %s237 = int_to_ptr.vmem [resolvable:$true] %s236
          %242 = dma.hbm_to_vmem [thread:$0]  %s3, 16384, %s237, [#allocation6], 256, 256, 16
        $region24: #{tpu_custom_call.1} parent=11 // pred_fallthru
          _
        // Predicated region
        $region25: #{tpu_custom_call.1} parent=11 // pred_check
          %p243 = pneg %p131
        $region26: #{tpu_custom_call.1} parent=11 // pred_check_branch
          %245 = sbr.rel (%p243) target = $region28
        $region27: #{tpu_custom_call.1} parent=11 // pred_region
          _
        $region28: #{tpu_custom_call.1} parent=11 // pred_fallthru
          _
        // Predicated region
        $region29: #{tpu_custom_call.1} parent=11 // pred_check
          %p246 = pneg %p152
        $region30: #{tpu_custom_call.1} parent=11 // pred_check_branch
          %248 = sbr.rel (%p246) target = $region32
        $region31: #{tpu_custom_call.1} parent=11 // pred_region
          %s250 = ssub.s32 4096, 4096
          %251 = vsyncadd [#allocation9], %s250
          %s252 = sshll.u32 [#allocation8], 4
          %s253 = int_to_ptr.vmem [resolvable:$true] %s252
          %258 = dma.hbm_to_vmem [thread:$0]  %s5, 4096, %s253, [#allocation9], 64, 64, 4
        $region32: #{tpu_custom_call.1} parent=11 // pred_fallthru
          _
        // Predicated region
        $region33: #{tpu_custom_call.1} parent=11 // pred_check
          %p259 = pneg %p173
        $region34: #{tpu_custom_call.1} parent=11 // pred_check_branch
          %261 = sbr.rel (%p259) target = $region36
        $region35: #{tpu_custom_call.1} parent=11 // pred_region
          _
        $region36: #{tpu_custom_call.1} parent=11 // pred_fallthru
          _
      $region12: #{tpu_custom_call.1} parent=5 // pred_fallthru
        _
      %p262 = scmp.lt.s32.totalorder %s21, 2
      // Predicated region
      $region37: #{tpu_custom_call.1} parent=5 // pred_check
        %p263 = pneg %p262
      $region38: #{tpu_custom_call.1} parent=5 // pred_check_branch
        %265 = sbr.rel (%p263) target = $region40
      $region39: #{tpu_custom_call.1} parent=5 // pred_region
        // Predicated region
        $region41: #{tpu_custom_call.1} parent=39 // pred_check
          %p266 = pneg %p41
        $region42: #{tpu_custom_call.1} parent=39 // pred_check_branch
          %268 = sbr.rel (%p266) target = $region44
        $region43: #{tpu_custom_call.1} parent=39 // pred_region
          %s269 = sand.u32 %s31, 1
          %s270 = scalar_lea.sflag [#allocation3], %s269
          %s271 = sand.u32 %s31, 1
          %s272 = smul.addr %s271, 28
          %s273 = scalar_lea.vmem [#allocation2], %s272
          %s275 = ssub.s32 448, 448
          %276 = vsyncadd %s270, %s275
          %s277 = smul.addr %s21, 7
          %s278 = smul.addr %s277, 64
          %s279 = scalar_lea.hbm %s0, %s278
          %s281 = sshll.u32 %s273, 4
          %s282 = int_to_ptr.vmem [resolvable:$true] %s281
          %284 = dma.hbm_to_vmem [thread:$0]  %s279, 448, %s282, %s270
        $region44: #{tpu_custom_call.1} parent=39 // pred_fallthru
          _
      $region40: #{tpu_custom_call.1} parent=5 // pred_fallthru
        _
      %p285 = scmp.le.s32.totalorder 1, %s21
      %p286 = scmp.lt.s32.totalorder %s21, 3
      %p287 = pnand %p285, %p286
      %p288 = pneg %p287
      // Predicated region
      $region45: #{tpu_custom_call.1} parent=5 // pred_check
        _
      $region46: #{tpu_custom_call.1} parent=5 // pred_check_branch
        %290 = sbr.rel (%p287) target = $region48
      $region47: #{tpu_custom_call.1} parent=5 // pred_region
        %s291 = ssub.s32 %s21, 1
        %s292 = sand.u32 %s34, 1
        %s293 = scalar_lea.sflag [#allocation3], %s292
        %s294 = sand.u32 %s34, 1
        %s295 = smul.addr %s294, 28
        %s296 = scalar_lea.vmem [#allocation2], %s295
        // Predicated region
        $region49: #{tpu_custom_call.1} parent=47 // pred_check
          %p297 = pneg %p47
        $region50: #{tpu_custom_call.1} parent=47 // pred_check_branch
          %299 = sbr.rel (%p297) target = $region52
        $region51: #{tpu_custom_call.1} parent=47 // pred_region
          %300 = dma.done %s293, 448
        $region52: #{tpu_custom_call.1} parent=47 // pred_fallthru
          _
        // Predicated region
        $region53: #{tpu_custom_call.1} parent=47 // pred_check
          %p301 = pneg %p68
        $region54: #{tpu_custom_call.1} parent=47 // pred_check_branch
          %303 = sbr.rel (%p301) target = $region56
        $region55: #{tpu_custom_call.1} parent=47 // pred_region
          %304 = dma.done [#allocation6], 25088
        $region56: #{tpu_custom_call.1} parent=47 // pred_fallthru
          _
        // Predicated region
        $region57: #{tpu_custom_call.1} parent=47 // pred_check
          %p305 = pneg %p110
        $region58: #{tpu_custom_call.1} parent=47 // pred_check_branch
          %307 = sbr.rel (%p305) target = $region60
        $region59: #{tpu_custom_call.1} parent=47 // pred_region
          %308 = dma.done [#allocation6], 16384
        $region60: #{tpu_custom_call.1} parent=47 // pred_fallthru
          _
        // Predicated region
        $region61: #{tpu_custom_call.1} parent=47 // pred_check
          %p309 = pneg %p152
        $region62: #{tpu_custom_call.1} parent=47 // pred_check_branch
          %311 = sbr.rel (%p309) target = $region64
        $region63: #{tpu_custom_call.1} parent=47 // pred_region
          %312 = dma.done [#allocation9], 4096
        $region64: #{tpu_custom_call.1} parent=47 // pred_fallthru
          _
        %s313 = sand.u32 %s34, 1
        %s314 = scalar_lea.sflag [#allocation3], %s313
        %s315 = sand.u32 %s34, 1
        %s316 = smul.addr %s315, 28
        %s317 = scalar_lea.vmem [#allocation2], %s316
        %p318 = pneg %p47
        %p319 = pneg %p44
        %p320 = pneg %p68
        %p321 = pneg %p65
        %p322 = pneg %p89
        %p323 = pneg %p86
        %p324 = pneg %p110
        %p325 = pneg %p107
        %p326 = pneg %p131
        %p327 = pneg %p128
        %p328 = pneg %p152
        %p329 = pneg %p149
        %p330 = pneg %p173
        %p331 = pneg %p170
        %p332 = pneg %p199
        %p333 = pneg %p196
        %s334 = sand.u32 %s186, 1
        %s335 = scalar_lea.sflag [#allocation4], %s334
        %s336 = sand.u32 %s186, 1
        %s337 = smul.addr %s336, 8
        %s338 = scalar_lea.vmem [#allocation10], %s337
        %v340 = vld [vmem:[%s296] sm:$0xff]
        %v341 = vld [vmem:[%s296 + $0x8] sm:$0xff]
        %v342 = vld [vmem:[%s296 + $0x10] sm:$0xff]
        %v343 = vld [vmem:[%s296 + $0x18] sm:$0xf]
        %v344 = vld [vmem:[#allocation5] sm:$0xff]
        %v345 = vld [vmem:[#allocation5 + $0x8] sm:$0xff]
        %v346 = vld [vmem:[#allocation5 + $0x10] sm:$0xff]
        %v347 = vld [vmem:[#allocation5 + $0x18] sm:$0xff]
        %v348 = vld [vmem:[#allocation5 + $0x20] sm:$0xff]
        %v349 = vld [vmem:[#allocation5 + $0x28] sm:$0xff]
        %v350 = vld [vmem:[#allocation5 + $0x30] sm:$0xff]
        %v351 = vld [vmem:[#allocation5 + $0x38] sm:$0xff]
        %v352 = vld [vmem:[#allocation5 + $0x40] sm:$0xff]
        %v353 = vld [vmem:[#allocation5 + $0x48] sm:$0xff]
        %v354 = vld [vmem:[#allocation5 + $0x50] sm:$0xff]
        %v355 = vld [vmem:[#allocation5 + $0x58] sm:$0xff]
        %v356 = vld [vmem:[#allocation5 + $0x60] sm:$0xff]
        %v357 = vld [vmem:[#allocation5 + $0x68] sm:$0xff]
        %v358 = vld [vmem:[#allocation5 + $0x70] sm:$0xff]
        %v359 = vld [vmem:[#allocation5 + $0x78] sm:$0xff]
        %v360 = vld [vmem:[#allocation5 + $0x80] sm:$0xff]
        %v361 = vld [vmem:[#allocation5 + $0x88] sm:$0xff]
        %v362 = vld [vmem:[#allocation5 + $0x90] sm:$0xff]
        %v363 = vld [vmem:[#allocation5 + $0x98] sm:$0xff]
        %v364 = vld [vmem:[#allocation5 + $0xa0] sm:$0xff]
        %v365 = vld [vmem:[#allocation5 + $0xa8] sm:$0xff]
        %v366 = vld [vmem:[#allocation5 + $0xb0] sm:$0xff]
        %v367 = vld [vmem:[#allocation5 + $0xb8] sm:$0xff]
        %v368 = vld [vmem:[#allocation5 + $0xc0] sm:$0xff]
        %v369 = vld [vmem:[#allocation5 + $0xc8] sm:$0xff]
        %v370 = vld [vmem:[#allocation5 + $0xd0] sm:$0xff]
        %v371 = vld [vmem:[#allocation5 + $0xd8] sm:$0xff]
        %v372 = vld [vmem:[#allocation5 + $0xe0] sm:$0xff]
        %v373 = vld [vmem:[#allocation5 + $0xe8] sm:$0xff]
        %v374 = vld [vmem:[#allocation5 + $0xf0] sm:$0xff]
        %v375 = vld [vmem:[#allocation5 + $0xf8] sm:$0xff]
        %v376 = vld [vmem:[#allocation5 + $0x100] sm:$0xff]
        %v377 = vld [vmem:[#allocation5 + $0x108] sm:$0xff]
        %v378 = vld [vmem:[#allocation5 + $0x110] sm:$0xff]
        %v379 = vld [vmem:[#allocation5 + $0x118] sm:$0xff]
        %v380 = vld [vmem:[#allocation5 + $0x120] sm:$0xff]
        %v381 = vld [vmem:[#allocation5 + $0x128] sm:$0xff]
        %v382 = vld [vmem:[#allocation5 + $0x130] sm:$0xff]
        %v383 = vld [vmem:[#allocation5 + $0x138] sm:$0xff]
        %v384 = vld [vmem:[#allocation5 + $0x140] sm:$0xff]
        %v385 = vld [vmem:[#allocation5 + $0x148] sm:$0xff]
        %v386 = vld [vmem:[#allocation5 + $0x150] sm:$0xff]
        %v387 = vld [vmem:[#allocation5 + $0x158] sm:$0xff]
        %v388 = vld [vmem:[#allocation5 + $0x160] sm:$0xff]
        %v389 = vld [vmem:[#allocation5 + $0x168] sm:$0xff]
        %v390 = vld [vmem:[#allocation5 + $0x170] sm:$0xff]
        %v391 = vld [vmem:[#allocation5 + $0x178] sm:$0xff]
        %v392 = vld [vmem:[#allocation5 + $0x180] sm:$0xff]
        %v393 = vld [vmem:[#allocation5 + $0x188] sm:$0xff]
        %v394 = vld [vmem:[#allocation5 + $0x190] sm:$0xff]
        %v395 = vld [vmem:[#allocation5 + $0x198] sm:$0xff]
        %v396 = vld [vmem:[#allocation5 + $0x1a0] sm:$0xff]
        %v397 = vld [vmem:[#allocation5 + $0x1a8] sm:$0xff]
        %v398 = vld [vmem:[#allocation5 + $0x1b0] sm:$0xff]
        %v399 = vld [vmem:[#allocation5 + $0x1b8] sm:$0xff]
        %v400 = vld [vmem:[#allocation5 + $0x1c0] sm:$0xff]
        %v401 = vld [vmem:[#allocation5 + $0x1c8] sm:$0xff]
        %v402 = vld [vmem:[#allocation5 + $0x1d0] sm:$0xff]
        %v403 = vld [vmem:[#allocation5 + $0x1d8] sm:$0xff]
        %v404 = vld [vmem:[#allocation5 + $0x1e0] sm:$0xff]
        %v405 = vld [vmem:[#allocation5 + $0x1e8] sm:$0xff]
        %v406 = vld [vmem:[#allocation5 + $0x1f0] sm:$0xff]
        %v407 = vld [vmem:[#allocation5 + $0x1f8] sm:$0xff]
        %v408 = vld [vmem:[#allocation5 + $0x200] sm:$0xff]
        %v409 = vld [vmem:[#allocation5 + $0x208] sm:$0xff]
        %v410 = vld [vmem:[#allocation5 + $0x210] sm:$0xff]
        %v411 = vld [vmem:[#allocation5 + $0x218] sm:$0xff]
        %v412 = vld [vmem:[#allocation5 + $0x220] sm:$0xff]
        %v413 = vld [vmem:[#allocation5 + $0x228] sm:$0xff]
        %v414 = vld [vmem:[#allocation5 + $0x230] sm:$0xff]
        %v415 = vld [vmem:[#allocation5 + $0x238] sm:$0xff]
        %v416 = vld [vmem:[#allocation5 + $0x240] sm:$0xff]
        %v417 = vld [vmem:[#allocation5 + $0x248] sm:$0xff]
        %v418 = vld [vmem:[#allocation5 + $0x250] sm:$0xff]
        %v419 = vld [vmem:[#allocation5 + $0x258] sm:$0xff]
        %v420 = vld [vmem:[#allocation5 + $0x260] sm:$0xff]
        %v421 = vld [vmem:[#allocation5 + $0x268] sm:$0xff]
        %v422 = vld [vmem:[#allocation5 + $0x270] sm:$0xff]
        %v423 = vld [vmem:[#allocation5 + $0x278] sm:$0xff]
        %v424 = vld [vmem:[#allocation5 + $0x280] sm:$0xff]
        %v425 = vld [vmem:[#allocation5 + $0x288] sm:$0xff]
        %v426 = vld [vmem:[#allocation5 + $0x290] sm:$0xff]
        %v427 = vld [vmem:[#allocation5 + $0x298] sm:$0xff]
        %v428 = vld [vmem:[#allocation5 + $0x2a0] sm:$0xff]
        %v429 = vld [vmem:[#allocation5 + $0x2a8] sm:$0xff]
        %v430 = vld [vmem:[#allocation5 + $0x2b0] sm:$0xff]
        %v431 = vld [vmem:[#allocation5 + $0x2b8] sm:$0xff]
        %v432 = vld [vmem:[#allocation5 + $0x2c0] sm:$0xff]
        %v433 = vld [vmem:[#allocation5 + $0x2c8] sm:$0xff]
        %v434 = vld [vmem:[#allocation5 + $0x2d0] sm:$0xff]
        %v435 = vld [vmem:[#allocation5 + $0x2d8] sm:$0xff]
        %v436 = vld [vmem:[#allocation5 + $0x2e0] sm:$0xff]
        %v437 = vld [vmem:[#allocation5 + $0x2e8] sm:$0xff]
        %v438 = vld [vmem:[#allocation5 + $0x2f0] sm:$0xff]
        %v439 = vld [vmem:[#allocation5 + $0x2f8] sm:$0xff]
        %v440 = vld [vmem:[#allocation5 + $0x300] sm:$0xff]
        %v441 = vld [vmem:[#allocation5 + $0x308] sm:$0xff]
        %v442 = vld [vmem:[#allocation5 + $0x310] sm:$0xff]
        %v443 = vld [vmem:[#allocation5 + $0x318] sm:$0xff]
        %v444 = vld [vmem:[#allocation5 + $0x320] sm:$0xff]
        %v445 = vld [vmem:[#allocation5 + $0x328] sm:$0xff]
        %v446 = vld [vmem:[#allocation5 + $0x330] sm:$0xff]
        %v447 = vld [vmem:[#allocation5 + $0x338] sm:$0xff]
        %v448 = vld [vmem:[#allocation5 + $0x340] sm:$0xff]
        %v449 = vld [vmem:[#allocation5 + $0x348] sm:$0xff]
        %v450 = vld [vmem:[#allocation5 + $0x350] sm:$0xff]
        %v451 = vld [vmem:[#allocation5 + $0x358] sm:$0xff]
        %v452 = vld [vmem:[#allocation5 + $0x360] sm:$0xff]
        %v453 = vld [vmem:[#allocation5 + $0x368] sm:$0xff]
        %v454 = vld [vmem:[#allocation5 + $0x370] sm:$0xff]
        %v455 = vld [vmem:[#allocation5 + $0x378] sm:$0xff]
        %v456 = vld [vmem:[#allocation5 + $0x380] sm:$0xff]
        %v457 = vld [vmem:[#allocation5 + $0x388] sm:$0xff]
        %v458 = vld [vmem:[#allocation5 + $0x390] sm:$0xff]
        %v459 = vld [vmem:[#allocation5 + $0x398] sm:$0xff]
        %v460 = vld [vmem:[#allocation5 + $0x3a0] sm:$0xff]
        %v461 = vld [vmem:[#allocation5 + $0x3a8] sm:$0xff]
        %v462 = vld [vmem:[#allocation5 + $0x3b0] sm:$0xff]
        %v463 = vld [vmem:[#allocation5 + $0x3b8] sm:$0xff]
        %v464 = vld [vmem:[#allocation5 + $0x3c0] sm:$0xff]
        %v465 = vld [vmem:[#allocation5 + $0x3c8] sm:$0xff]
        %v466 = vld [vmem:[#allocation5 + $0x3d0] sm:$0xff]
        %v467 = vld [vmem:[#allocation5 + $0x3d8] sm:$0xff]
        %v468 = vld [vmem:[#allocation5 + $0x3e0] sm:$0xff]
        %v469 = vld [vmem:[#allocation5 + $0x3e8] sm:$0xff]
        %v470 = vld [vmem:[#allocation5 + $0x3f0] sm:$0xff]
        %v471 = vld [vmem:[#allocation5 + $0x3f8] sm:$0xff]
        %v472 = vld [vmem:[#allocation5 + $0x400] sm:$0xff]
        %v473 = vld [vmem:[#allocation5 + $0x408] sm:$0xff]
        %v474 = vld [vmem:[#allocation5 + $0x410] sm:$0xff]
        %v475 = vld [vmem:[#allocation5 + $0x418] sm:$0xff]
        %v476 = vld [vmem:[#allocation5 + $0x420] sm:$0xff]
        %v477 = vld [vmem:[#allocation5 + $0x428] sm:$0xff]
        %v478 = vld [vmem:[#allocation5 + $0x430] sm:$0xff]
        %v479 = vld [vmem:[#allocation5 + $0x438] sm:$0xff]
        %v480 = vld [vmem:[#allocation5 + $0x440] sm:$0xff]
        %v481 = vld [vmem:[#allocation5 + $0x448] sm:$0xff]
        %v482 = vld [vmem:[#allocation5 + $0x450] sm:$0xff]
        %v483 = vld [vmem:[#allocation5 + $0x458] sm:$0xff]
        %v484 = vld [vmem:[#allocation5 + $0x460] sm:$0xff]
        %v485 = vld [vmem:[#allocation5 + $0x468] sm:$0xff]
        %v486 = vld [vmem:[#allocation5 + $0x470] sm:$0xff]
        %v487 = vld [vmem:[#allocation5 + $0x478] sm:$0xff]
        %v488 = vld [vmem:[#allocation5 + $0x480] sm:$0xff]
        %v489 = vld [vmem:[#allocation5 + $0x488] sm:$0xff]
        %v490 = vld [vmem:[#allocation5 + $0x490] sm:$0xff]
        %v491 = vld [vmem:[#allocation5 + $0x498] sm:$0xff]
        %v492 = vld [vmem:[#allocation5 + $0x4a0] sm:$0xff]
        %v493 = vld [vmem:[#allocation5 + $0x4a8] sm:$0xff]
        %v494 = vld [vmem:[#allocation5 + $0x4b0] sm:$0xff]
        %v495 = vld [vmem:[#allocation5 + $0x4b8] sm:$0xff]
        %v496 = vld [vmem:[#allocation5 + $0x4c0] sm:$0xff]
        %v497 = vld [vmem:[#allocation5 + $0x4c8] sm:$0xff]
        %v498 = vld [vmem:[#allocation5 + $0x4d0] sm:$0xff]
        %v499 = vld [vmem:[#allocation5 + $0x4d8] sm:$0xff]
        %v500 = vld [vmem:[#allocation5 + $0x4e0] sm:$0xff]
        %v501 = vld [vmem:[#allocation5 + $0x4e8] sm:$0xff]
        %v502 = vld [vmem:[#allocation5 + $0x4f0] sm:$0xff]
        %v503 = vld [vmem:[#allocation5 + $0x4f8] sm:$0xff]
        %v504 = vld [vmem:[#allocation5 + $0x500] sm:$0xff]
        %v505 = vld [vmem:[#allocation5 + $0x508] sm:$0xff]
        %v506 = vld [vmem:[#allocation5 + $0x510] sm:$0xff]
        %v507 = vld [vmem:[#allocation5 + $0x518] sm:$0xff]
        %v508 = vld [vmem:[#allocation5 + $0x520] sm:$0xff]
        %v509 = vld [vmem:[#allocation5 + $0x528] sm:$0xff]
        %v510 = vld [vmem:[#allocation5 + $0x530] sm:$0xff]
        %v511 = vld [vmem:[#allocation5 + $0x538] sm:$0xff]
        %v512 = vld [vmem:[#allocation5 + $0x540] sm:$0xff]
        %v513 = vld [vmem:[#allocation5 + $0x548] sm:$0xff]
        %v514 = vld [vmem:[#allocation5 + $0x550] sm:$0xff]
        %v515 = vld [vmem:[#allocation5 + $0x558] sm:$0xff]
        %v516 = vld [vmem:[#allocation5 + $0x560] sm:$0xff]
        %v517 = vld [vmem:[#allocation5 + $0x568] sm:$0xff]
        %v518 = vld [vmem:[#allocation5 + $0x570] sm:$0xff]
        %v519 = vld [vmem:[#allocation5 + $0x578] sm:$0xff]
        %v520 = vld [vmem:[#allocation5 + $0x580] sm:$0xff]
        %v521 = vld [vmem:[#allocation5 + $0x588] sm:$0xff]
        %v522 = vld [vmem:[#allocation5 + $0x590] sm:$0xff]
        %v523 = vld [vmem:[#allocation5 + $0x598] sm:$0xff]
        %v524 = vld [vmem:[#allocation5 + $0x5a0] sm:$0xff]
        %v525 = vld [vmem:[#allocation5 + $0x5a8] sm:$0xff]
        %v526 = vld [vmem:[#allocation5 + $0x5b0] sm:$0xff]
        %v527 = vld [vmem:[#allocation5 + $0x5b8] sm:$0xff]
        %v528 = vld [vmem:[#allocation5 + $0x5c0] sm:$0xff]
        %v529 = vld [vmem:[#allocation5 + $0x5c8] sm:$0xff]
        %v530 = vld [vmem:[#allocation5 + $0x5d0] sm:$0xff]
        %v531 = vld [vmem:[#allocation5 + $0x5d8] sm:$0xff]
        %v532 = vld [vmem:[#allocation5 + $0x5e0] sm:$0xff]
        %v533 = vld [vmem:[#allocation5 + $0x5e8] sm:$0xff]
        %v534 = vld [vmem:[#allocation5 + $0x5f0] sm:$0xff]
        %v535 = vld [vmem:[#allocation5 + $0x5f8] sm:$0xff]
        %v536 = vld [vmem:[#allocation5 + $0x600] sm:$0xff]
        %v537 = vld [vmem:[#allocation5 + $0x608] sm:$0xff]
        %v538 = vld [vmem:[#allocation5 + $0x610] sm:$0xff]
        %v539 = vld [vmem:[#allocation5 + $0x618] sm:$0xff]
        %v540 = vld [vmem:[%s2] sm:$0xf]
        %v542 = vlaneseq
        %v543 = vshrl.u32 %v542, 7
        %v544 = vsub.s32 0, %v543
        %v545 = vrot.slane %v540, %v544
        %v546 = vlaneseq
        %v547 = vshrl.u32 %v546, 7
        %v548 = vsub.s32 1, %v547
        %v549 = vrot.slane %v540, %v548
        %v550 = vlaneseq
        %v551 = vshrl.u32 %v550, 7
        %v552 = vsub.s32 2, %v551
        %v553 = vrot.slane %v540, %v552
        %v554 = vlaneseq
        %v555 = vshrl.u32 %v554, 7
        %v556 = vsub.s32 3, %v555
        %v557 = vrot.slane %v540, %v556
        %v566 = vunpack.c.l.b16 %v340
        %v567 = vunpack.c.h.b16 %v340
        %v568 = vunpack.c.l.b16 %v341
        %v569 = vunpack.c.h.b16 %v341
        %v570 = vunpack.c.l.b16 %v342
        %v571 = vunpack.c.h.b16 %v342
        %v572 = vunpack.c.l.b16 %v343
        %v573 = vpack.c.b16 %v566, %v566
        %v574 = vpack.c.b16 %v567, %v567
        %v575 = vpack.c.b16 %v568, %v568
        %v576 = vpack.c.b16 %v569, %v569
        %v577 = vpack.c.b16 %v570, %v570
        %v578 = vpack.c.b16 %v571, %v571
        %v579 = vpack.c.b16 %v572, %v572
        %v782 = vunpack.c.l.b16 %v344
        %v783 = vunpack.c.h.b16 %v344
        %v784 = vunpack.c.l.b16 %v345
        %v785 = vunpack.c.h.b16 %v345
        %v786 = vunpack.c.l.b16 %v346
        %v787 = vunpack.c.h.b16 %v346
        %v788 = vunpack.c.l.b16 %v347
        %v789 = vunpack.c.h.b16 %v347
        %v790 = vunpack.c.l.b16 %v348
        %v791 = vunpack.c.h.b16 %v348
        %v792 = vunpack.c.l.b16 %v349
        %v793 = vunpack.c.h.b16 %v349
        %v794 = vunpack.c.l.b16 %v350
        %v795 = vunpack.c.h.b16 %v350
        %v796 = vunpack.c.l.b16 %v351
        %v797 = vunpack.c.h.b16 %v351
        %v798 = vunpack.c.l.b16 %v352
        %v799 = vunpack.c.h.b16 %v352
        %v800 = vunpack.c.l.b16 %v353
        %v801 = vunpack.c.h.b16 %v353
        %v802 = vunpack.c.l.b16 %v354
        %v803 = vunpack.c.h.b16 %v354
        %v804 = vunpack.c.l.b16 %v355
        %v805 = vunpack.c.h.b16 %v355
        %v806 = vunpack.c.l.b16 %v356
        %v807 = vunpack.c.h.b16 %v356
        %v808 = vunpack.c.l.b16 %v357
        %v809 = vunpack.c.h.b16 %v357
        %v810 = vunpack.c.l.b16 %v358
        %v811 = vunpack.c.h.b16 %v358
        %v812 = vunpack.c.l.b16 %v359
        %v813 = vunpack.c.h.b16 %v359
        %v814 = vunpack.c.l.b16 %v360
        %v815 = vunpack.c.h.b16 %v360
        %v816 = vunpack.c.l.b16 %v361
        %v817 = vunpack.c.h.b16 %v361
        %v818 = vunpack.c.l.b16 %v362
        %v819 = vunpack.c.h.b16 %v362
        %v820 = vunpack.c.l.b16 %v363
        %v821 = vunpack.c.h.b16 %v363
        %v822 = vunpack.c.l.b16 %v364
        %v823 = vunpack.c.h.b16 %v364
        %v824 = vunpack.c.l.b16 %v365
        %v825 = vunpack.c.h.b16 %v365
        %v826 = vunpack.c.l.b16 %v366
        %v827 = vunpack.c.h.b16 %v366
        %v828 = vunpack.c.l.b16 %v367
        %v829 = vunpack.c.h.b16 %v367
        %v830 = vunpack.c.l.b16 %v368
        %v831 = vunpack.c.h.b16 %v368
        %v832 = vunpack.c.l.b16 %v369
        %v833 = vunpack.c.h.b16 %v369
        %v834 = vunpack.c.l.b16 %v370
        %v835 = vunpack.c.h.b16 %v370
        %v836 = vunpack.c.l.b16 %v371
        %v837 = vunpack.c.h.b16 %v371
        %v838 = vunpack.c.l.b16 %v372
        %v839 = vunpack.c.h.b16 %v372
        %v840 = vunpack.c.l.b16 %v373
        %v841 = vunpack.c.h.b16 %v373
        %v842 = vunpack.c.l.b16 %v374
        %v843 = vunpack.c.h.b16 %v374
        %v844 = vunpack.c.l.b16 %v375
        %v845 = vunpack.c.h.b16 %v375
        %v846 = vunpack.c.l.b16 %v376
        %v847 = vunpack.c.h.b16 %v376
        %v848 = vunpack.c.l.b16 %v377
        %v849 = vunpack.c.h.b16 %v377
        %v850 = vunpack.c.l.b16 %v378
        %v851 = vunpack.c.h.b16 %v378
        %v852 = vunpack.c.l.b16 %v379
        %v853 = vunpack.c.h.b16 %v379
        %v854 = vunpack.c.l.b16 %v380
        %v855 = vunpack.c.h.b16 %v380
        %v856 = vunpack.c.l.b16 %v381
        %v857 = vunpack.c.h.b16 %v381
        %v858 = vunpack.c.l.b16 %v382
        %v859 = vunpack.c.h.b16 %v382
        %v860 = vunpack.c.l.b16 %v383
        %v861 = vunpack.c.h.b16 %v383
        %v862 = vunpack.c.l.b16 %v384
        %v863 = vunpack.c.h.b16 %v384
        %v864 = vunpack.c.l.b16 %v385
        %v865 = vunpack.c.h.b16 %v385
        %v866 = vunpack.c.l.b16 %v386
        %v867 = vunpack.c.h.b16 %v386
        %v868 = vunpack.c.l.b16 %v387
        %v869 = vunpack.c.h.b16 %v387
        %v870 = vunpack.c.l.b16 %v388
        %v871 = vunpack.c.h.b16 %v388
        %v872 = vunpack.c.l.b16 %v389
        %v873 = vunpack.c.h.b16 %v389
        %v874 = vunpack.c.l.b16 %v390
        %v875 = vunpack.c.h.b16 %v390
        %v876 = vunpack.c.l.b16 %v391
        %v877 = vunpack.c.h.b16 %v391
        %v878 = vunpack.c.l.b16 %v392
        %v879 = vunpack.c.h.b16 %v392
        %v880 = vunpack.c.l.b16 %v393
        %v881 = vunpack.c.h.b16 %v393
        %v882 = vunpack.c.l.b16 %v394
        %v883 = vunpack.c.h.b16 %v394
        %v884 = vunpack.c.l.b16 %v395
        %v885 = vunpack.c.h.b16 %v395
        %v886 = vunpack.c.l.b16 %v396
        %v887 = vunpack.c.h.b16 %v396
        %v888 = vunpack.c.l.b16 %v397
        %v889 = vunpack.c.h.b16 %v397
        %v890 = vunpack.c.l.b16 %v398
        %v891 = vunpack.c.h.b16 %v398
        %v892 = vunpack.c.l.b16 %v399
        %v893 = vunpack.c.h.b16 %v399
        %v894 = vunpack.c.l.b16 %v400
        %v895 = vunpack.c.h.b16 %v400
        %v896 = vunpack.c.l.b16 %v401
        %v897 = vunpack.c.h.b16 %v401
        %v898 = vunpack.c.l.b16 %v402
        %v899 = vunpack.c.h.b16 %v402
        %v900 = vunpack.c.l.b16 %v403
        %v901 = vunpack.c.h.b16 %v403
        %v902 = vunpack.c.l.b16 %v404
        %v903 = vunpack.c.h.b16 %v404
        %v904 = vunpack.c.l.b16 %v405
        %v905 = vunpack.c.h.b16 %v405
        %v906 = vunpack.c.l.b16 %v406
        %v907 = vunpack.c.h.b16 %v406
        %v908 = vunpack.c.l.b16 %v407
        %v909 = vunpack.c.h.b16 %v407
        %v910 = vunpack.c.l.b16 %v408
        %v911 = vunpack.c.h.b16 %v408
        %v912 = vunpack.c.l.b16 %v409
        %v913 = vunpack.c.h.b16 %v409
        %v914 = vunpack.c.l.b16 %v410
        %v915 = vunpack.c.h.b16 %v410
        %v916 = vunpack.c.l.b16 %v411
        %v917 = vunpack.c.h.b16 %v411
        %v918 = vunpack.c.l.b16 %v412
        %v919 = vunpack.c.h.b16 %v412
        %v920 = vunpack.c.l.b16 %v413
        %v921 = vunpack.c.h.b16 %v413
        %v922 = vunpack.c.l.b16 %v414
        %v923 = vunpack.c.h.b16 %v414
        %v924 = vunpack.c.l.b16 %v415
        %v925 = vunpack.c.h.b16 %v415
        %v926 = vunpack.c.l.b16 %v416
        %v927 = vunpack.c.h.b16 %v416
        %v928 = vunpack.c.l.b16 %v417
        %v929 = vunpack.c.h.b16 %v417
        %v930 = vunpack.c.l.b16 %v418
        %v931 = vunpack.c.h.b16 %v418
        %v932 = vunpack.c.l.b16 %v419
        %v933 = vunpack.c.h.b16 %v419
        %v934 = vunpack.c.l.b16 %v420
        %v935 = vunpack.c.h.b16 %v420
        %v936 = vunpack.c.l.b16 %v421
        %v937 = vunpack.c.h.b16 %v421
        %v938 = vunpack.c.l.b16 %v422
        %v939 = vunpack.c.h.b16 %v422
        %v940 = vunpack.c.l.b16 %v423
        %v941 = vunpack.c.h.b16 %v423
        %v942 = vunpack.c.l.b16 %v424
        %v943 = vunpack.c.h.b16 %v424
        %v944 = vunpack.c.l.b16 %v425
        %v945 = vunpack.c.h.b16 %v425
        %v946 = vunpack.c.l.b16 %v426
        %v947 = vunpack.c.h.b16 %v426
        %v948 = vunpack.c.l.b16 %v427
        %v949 = vunpack.c.h.b16 %v427
        %v950 = vunpack.c.l.b16 %v428
        %v951 = vunpack.c.h.b16 %v428
        %v952 = vunpack.c.l.b16 %v429
        %v953 = vunpack.c.h.b16 %v429
        %v954 = vunpack.c.l.b16 %v430
        %v955 = vunpack.c.h.b16 %v430
        %v956 = vunpack.c.l.b16 %v431
        %v957 = vunpack.c.h.b16 %v431
        %v958 = vunpack.c.l.b16 %v432
        %v959 = vunpack.c.h.b16 %v432
        %v960 = vunpack.c.l.b16 %v433
        %v961 = vunpack.c.h.b16 %v433
        %v962 = vunpack.c.l.b16 %v434
        %v963 = vunpack.c.h.b16 %v434
        %v964 = vunpack.c.l.b16 %v435
        %v965 = vunpack.c.h.b16 %v435
        %v966 = vunpack.c.l.b16 %v436
        %v967 = vunpack.c.h.b16 %v436
        %v968 = vunpack.c.l.b16 %v437
        %v969 = vunpack.c.h.b16 %v437
        %v970 = vunpack.c.l.b16 %v438
        %v971 = vunpack.c.h.b16 %v438
        %v972 = vunpack.c.l.b16 %v439
        %v973 = vunpack.c.h.b16 %v439
        %v974 = vunpack.c.l.b16 %v440
        %v975 = vunpack.c.h.b16 %v440
        %v976 = vunpack.c.l.b16 %v441
        %v977 = vunpack.c.h.b16 %v441
        %v978 = vunpack.c.l.b16 %v442
        %v979 = vunpack.c.h.b16 %v442
        %v980 = vunpack.c.l.b16 %v443
        %v981 = vunpack.c.h.b16 %v443
        %v982 = vunpack.c.l.b16 %v444
        %v983 = vunpack.c.h.b16 %v444
        %v984 = vunpack.c.l.b16 %v445
        %v985 = vunpack.c.h.b16 %v445
        %v986 = vunpack.c.l.b16 %v446
        %v987 = vunpack.c.h.b16 %v446
        %v988 = vunpack.c.l.b16 %v447
        %v989 = vunpack.c.h.b16 %v447
        %v990 = vunpack.c.l.b16 %v448
        %v991 = vunpack.c.h.b16 %v448
        %v992 = vunpack.c.l.b16 %v449
        %v993 = vunpack.c.h.b16 %v449
        %v994 = vunpack.c.l.b16 %v450
        %v995 = vunpack.c.h.b16 %v450
        %v996 = vunpack.c.l.b16 %v451
        %v997 = vunpack.c.h.b16 %v451
        %v998 = vunpack.c.l.b16 %v452
        %v999 = vunpack.c.h.b16 %v452
        %v1000 = vunpack.c.l.b16 %v453
        %v1001 = vunpack.c.h.b16 %v453
        %v1002 = vunpack.c.l.b16 %v454
        %v1003 = vunpack.c.h.b16 %v454
        %v1004 = vunpack.c.l.b16 %v455
        %v1005 = vunpack.c.h.b16 %v455
        %v1006 = vunpack.c.l.b16 %v456
        %v1007 = vunpack.c.h.b16 %v456
        %v1008 = vunpack.c.l.b16 %v457
        %v1009 = vunpack.c.h.b16 %v457
        %v1010 = vunpack.c.l.b16 %v458
        %v1011 = vunpack.c.h.b16 %v458
        %v1012 = vunpack.c.l.b16 %v459
        %v1013 = vunpack.c.h.b16 %v459
        %v1014 = vunpack.c.l.b16 %v460
        %v1015 = vunpack.c.h.b16 %v460
        %v1016 = vunpack.c.l.b16 %v461
        %v1017 = vunpack.c.h.b16 %v461
        %v1018 = vunpack.c.l.b16 %v462
        %v1019 = vunpack.c.h.b16 %v462
        %v1020 = vunpack.c.l.b16 %v463
        %v1021 = vunpack.c.h.b16 %v463
        %v1022 = vunpack.c.l.b16 %v464
        %v1023 = vunpack.c.h.b16 %v464
        %v1024 = vunpack.c.l.b16 %v465
        %v1025 = vunpack.c.h.b16 %v465
        %v1026 = vunpack.c.l.b16 %v466
        %v1027 = vunpack.c.h.b16 %v466
        %v1028 = vunpack.c.l.b16 %v467
        %v1029 = vunpack.c.h.b16 %v467
        %v1030 = vunpack.c.l.b16 %v468
        %v1031 = vunpack.c.h.b16 %v468
        %v1032 = vunpack.c.l.b16 %v469
        %v1033 = vunpack.c.h.b16 %v469
        %v1034 = vunpack.c.l.b16 %v470
        %v1035 = vunpack.c.h.b16 %v470
        %v1036 = vunpack.c.l.b16 %v471
        %v1037 = vunpack.c.h.b16 %v471
        %v1038 = vunpack.c.l.b16 %v472
        %v1039 = vunpack.c.h.b16 %v472
        %v1040 = vunpack.c.l.b16 %v473
        %v1041 = vunpack.c.h.b16 %v473
        %v1042 = vunpack.c.l.b16 %v474
        %v1043 = vunpack.c.h.b16 %v474
        %v1044 = vunpack.c.l.b16 %v475
        %v1045 = vunpack.c.h.b16 %v475
        %v1046 = vunpack.c.l.b16 %v476
        %v1047 = vunpack.c.h.b16 %v476
        %v1048 = vunpack.c.l.b16 %v477
        %v1049 = vunpack.c.h.b16 %v477
        %v1050 = vunpack.c.l.b16 %v478
        %v1051 = vunpack.c.h.b16 %v478
        %v1052 = vunpack.c.l.b16 %v479
        %v1053 = vunpack.c.h.b16 %v479
        %v1054 = vunpack.c.l.b16 %v480
        %v1055 = vunpack.c.h.b16 %v480
        %v1056 = vunpack.c.l.b16 %v481
        %v1057 = vunpack.c.h.b16 %v481
        %v1058 = vunpack.c.l.b16 %v482
        %v1059 = vunpack.c.h.b16 %v482
        %v1060 = vunpack.c.l.b16 %v483
        %v1061 = vunpack.c.h.b16 %v483
        %v1062 = vunpack.c.l.b16 %v484
        %v1063 = vunpack.c.h.b16 %v484
        %v1064 = vunpack.c.l.b16 %v485
        %v1065 = vunpack.c.h.b16 %v485
        %v1066 = vunpack.c.l.b16 %v486
        %v1067 = vunpack.c.h.b16 %v486
        %v1068 = vunpack.c.l.b16 %v487
        %v1069 = vunpack.c.h.b16 %v487
        %v1070 = vunpack.c.l.b16 %v488
        %v1071 = vunpack.c.h.b16 %v488
        %v1072 = vunpack.c.l.b16 %v489
        %v1073 = vunpack.c.h.b16 %v489
        %v1074 = vunpack.c.l.b16 %v490
        %v1075 = vunpack.c.h.b16 %v490
        %v1076 = vunpack.c.l.b16 %v491
        %v1077 = vunpack.c.h.b16 %v491
        %v1078 = vunpack.c.l.b16 %v492
        %v1079 = vunpack.c.h.b16 %v492
        %v1080 = vunpack.c.l.b16 %v493
        %v1081 = vunpack.c.h.b16 %v493
        %v1082 = vunpack.c.l.b16 %v494
        %v1083 = vunpack.c.h.b16 %v494
        %v1084 = vunpack.c.l.b16 %v495
        %v1085 = vunpack.c.h.b16 %v495
        %v1086 = vunpack.c.l.b16 %v496
        %v1087 = vunpack.c.h.b16 %v496
        %v1088 = vunpack.c.l.b16 %v497
        %v1089 = vunpack.c.h.b16 %v497
        %v1090 = vunpack.c.l.b16 %v498
        %v1091 = vunpack.c.h.b16 %v498
        %v1092 = vunpack.c.l.b16 %v499
        %v1093 = vunpack.c.h.b16 %v499
        %v1094 = vunpack.c.l.b16 %v500
        %v1095 = vunpack.c.h.b16 %v500
        %v1096 = vunpack.c.l.b16 %v501
        %v1097 = vunpack.c.h.b16 %v501
        %v1098 = vunpack.c.l.b16 %v502
        %v1099 = vunpack.c.h.b16 %v502
        %v1100 = vunpack.c.l.b16 %v503
        %v1101 = vunpack.c.h.b16 %v503
        %v1102 = vunpack.c.l.b16 %v504
        %v1103 = vunpack.c.h.b16 %v504
        %v1104 = vunpack.c.l.b16 %v505
        %v1105 = vunpack.c.h.b16 %v505
        %v1106 = vunpack.c.l.b16 %v506
        %v1107 = vunpack.c.h.b16 %v506
        %v1108 = vunpack.c.l.b16 %v507
        %v1109 = vunpack.c.h.b16 %v507
        %v1110 = vunpack.c.l.b16 %v508
        %v1111 = vunpack.c.h.b16 %v508
        %v1112 = vunpack.c.l.b16 %v509
        %v1113 = vunpack.c.h.b16 %v509
        %v1114 = vunpack.c.l.b16 %v510
        %v1115 = vunpack.c.h.b16 %v510
        %v1116 = vunpack.c.l.b16 %v511
        %v1117 = vunpack.c.h.b16 %v511
        %v1118 = vunpack.c.l.b16 %v512
        %v1119 = vunpack.c.h.b16 %v512
        %v1120 = vunpack.c.l.b16 %v513
        %v1121 = vunpack.c.h.b16 %v513
        %v1122 = vunpack.c.l.b16 %v514
        %v1123 = vunpack.c.h.b16 %v514
        %v1124 = vunpack.c.l.b16 %v515
        %v1125 = vunpack.c.h.b16 %v515
        %v1126 = vunpack.c.l.b16 %v516
        %v1127 = vunpack.c.h.b16 %v516
        %v1128 = vunpack.c.l.b16 %v517
        %v1129 = vunpack.c.h.b16 %v517
        %v1130 = vunpack.c.l.b16 %v518
        %v1131 = vunpack.c.h.b16 %v518
        %v1132 = vunpack.c.l.b16 %v519
        %v1133 = vunpack.c.h.b16 %v519
        %v1134 = vunpack.c.l.b16 %v520
        %v1135 = vunpack.c.h.b16 %v520
        %v1136 = vunpack.c.l.b16 %v521
        %v1137 = vunpack.c.h.b16 %v521
        %v1138 = vunpack.c.l.b16 %v522
        %v1139 = vunpack.c.h.b16 %v522
        %v1140 = vunpack.c.l.b16 %v523
        %v1141 = vunpack.c.h.b16 %v523
        %v1142 = vunpack.c.l.b16 %v524
        %v1143 = vunpack.c.h.b16 %v524
        %v1144 = vunpack.c.l.b16 %v525
        %v1145 = vunpack.c.h.b16 %v525
        %v1146 = vunpack.c.l.b16 %v526
        %v1147 = vunpack.c.h.b16 %v526
        %v1148 = vunpack.c.l.b16 %v527
        %v1149 = vunpack.c.h.b16 %v527
        %v1150 = vunpack.c.l.b16 %v528
        %v1151 = vunpack.c.h.b16 %v528
        %v1152 = vunpack.c.l.b16 %v529
        %v1153 = vunpack.c.h.b16 %v529
        %v1154 = vunpack.c.l.b16 %v530
        %v1155 = vunpack.c.h.b16 %v530
        %v1156 = vunpack.c.l.b16 %v531
        %v1157 = vunpack.c.h.b16 %v531
        %v1158 = vunpack.c.l.b16 %v532
        %v1159 = vunpack.c.h.b16 %v532
        %v1160 = vunpack.c.l.b16 %v533
        %v1161 = vunpack.c.h.b16 %v533
        %v1162 = vunpack.c.l.b16 %v534
        %v1163 = vunpack.c.h.b16 %v534
        %v1164 = vunpack.c.l.b16 %v535
        %v1165 = vunpack.c.h.b16 %v535
        %v1166 = vunpack.c.l.b16 %v536
        %v1167 = vunpack.c.h.b16 %v536
        %v1168 = vunpack.c.l.b16 %v537
        %v1169 = vunpack.c.h.b16 %v537
        %v1170 = vunpack.c.l.b16 %v538
        %v1171 = vunpack.c.h.b16 %v538
        %v1172 = vunpack.c.l.b16 %v539
        %v1173 = vunpack.c.h.b16 %v539
        %v1174 = vpack.c.b16 %v786, %v782
        %v1175 = vpack.c.b16 %v787, %v783
        %v1176 = vpack.c.b16 %v788, %v784
        %v1177 = vpack.c.b16 %v789, %v785
        %v1178 = vpack.c.b16 %v794, %v790
        %v1179 = vpack.c.b16 %v795, %v791
        %v1180 = vpack.c.b16 %v796, %v792
        %v1181 = vpack.c.b16 %v797, %v793
        %v1182 = vpack.c.b16 %v802, %v798
        %v1183 = vpack.c.b16 %v803, %v799
        %v1184 = vpack.c.b16 %v804, %v800
        %v1185 = vpack.c.b16 %v805, %v801
        %v1186 = vpack.c.b16 %v810, %v806
        %v1187 = vpack.c.b16 %v811, %v807
        %v1188 = vpack.c.b16 %v812, %v808
        %v1189 = vpack.c.b16 %v813, %v809
        %v1190 = vpack.c.b16 %v818, %v814
        %v1191 = vpack.c.b16 %v819, %v815
        %v1192 = vpack.c.b16 %v820, %v816
        %v1193 = vpack.c.b16 %v821, %v817
        %v1194 = vpack.c.b16 %v826, %v822
        %v1195 = vpack.c.b16 %v827, %v823
        %v1196 = vpack.c.b16 %v828, %v824
        %v1197 = vpack.c.b16 %v829, %v825
        %v1198 = vpack.c.b16 %v834, %v830
        %v1199 = vpack.c.b16 %v835, %v831
        %v1200 = vpack.c.b16 %v836, %v832
        %v1201 = vpack.c.b16 %v837, %v833
        %v1202 = vpack.c.b16 %v842, %v838
        %v1203 = vpack.c.b16 %v843, %v839
        %v1204 = vpack.c.b16 %v844, %v840
        %v1205 = vpack.c.b16 %v845, %v841
        %v1206 = vpack.c.b16 %v850, %v846
        %v1207 = vpack.c.b16 %v851, %v847
        %v1208 = vpack.c.b16 %v852, %v848
        %v1209 = vpack.c.b16 %v853, %v849
        %v1210 = vpack.c.b16 %v858, %v854
        %v1211 = vpack.c.b16 %v859, %v855
        %v1212 = vpack.c.b16 %v860, %v856
        %v1213 = vpack.c.b16 %v861, %v857
        %v1214 = vpack.c.b16 %v866, %v862
        %v1215 = vpack.c.b16 %v867, %v863
        %v1216 = vpack.c.b16 %v868, %v864
        %v1217 = vpack.c.b16 %v869, %v865
        %v1218 = vpack.c.b16 %v874, %v870
        %v1219 = vpack.c.b16 %v875, %v871
        %v1220 = vpack.c.b16 %v876, %v872
        %v1221 = vpack.c.b16 %v877, %v873
        %v1222 = vpack.c.b16 %v882, %v878
        %v1223 = vpack.c.b16 %v883, %v879
        %v1224 = vpack.c.b16 %v884, %v880
        %v1225 = vpack.c.b16 %v885, %v881
        %v1226 = vpack.c.b16 %v890, %v886
        %v1227 = vpack.c.b16 %v891, %v887
        %v1228 = vpack.c.b16 %v892, %v888
        %v1229 = vpack.c.b16 %v893, %v889
        %v1230 = vpack.c.b16 %v898, %v894
        %v1231 = vpack.c.b16 %v899, %v895
        %v1232 = vpack.c.b16 %v900, %v896
        %v1233 = vpack.c.b16 %v901, %v897
        %v1234 = vpack.c.b16 %v906, %v902
        %v1235 = vpack.c.b16 %v907, %v903
        %v1236 = vpack.c.b16 %v908, %v904
        %v1237 = vpack.c.b16 %v909, %v905
        %v1238 = vpack.c.b16 %v914, %v910
        %v1239 = vpack.c.b16 %v915, %v911
        %v1240 = vpack.c.b16 %v916, %v912
        %v1241 = vpack.c.b16 %v917, %v913
        %v1242 = vpack.c.b16 %v922, %v918
        %v1243 = vpack.c.b16 %v923, %v919
        %v1244 = vpack.c.b16 %v924, %v920
        %v1245 = vpack.c.b16 %v925, %v921
        %v1246 = vpack.c.b16 %v930, %v926
        %v1247 = vpack.c.b16 %v931, %v927
        %v1248 = vpack.c.b16 %v932, %v928
        %v1249 = vpack.c.b16 %v933, %v929
        %v1250 = vpack.c.b16 %v938, %v934
        %v1251 = vpack.c.b16 %v939, %v935
        %v1252 = vpack.c.b16 %v940, %v936
        %v1253 = vpack.c.b16 %v941, %v937
        %v1254 = vpack.c.b16 %v946, %v942
        %v1255 = vpack.c.b16 %v947, %v943
        %v1256 = vpack.c.b16 %v948, %v944
        %v1257 = vpack.c.b16 %v949, %v945
        %v1258 = vpack.c.b16 %v954, %v950
        %v1259 = vpack.c.b16 %v955, %v951
        %v1260 = vpack.c.b16 %v956, %v952
        %v1261 = vpack.c.b16 %v957, %v953
        %v1262 = vpack.c.b16 %v962, %v958
        %v1263 = vpack.c.b16 %v963, %v959
        %v1264 = vpack.c.b16 %v964, %v960
        %v1265 = vpack.c.b16 %v965, %v961
        %v1266 = vpack.c.b16 %v970, %v966
        %v1267 = vpack.c.b16 %v971, %v967
        %v1268 = vpack.c.b16 %v972, %v968
        %v1269 = vpack.c.b16 %v973, %v969
        %v1270 = vpack.c.b16 %v978, %v974
        %v1271 = vpack.c.b16 %v979, %v975
        %v1272 = vpack.c.b16 %v980, %v976
        %v1273 = vpack.c.b16 %v981, %v977
        %v1274 = vpack.c.b16 %v986, %v982
        %v1275 = vpack.c.b16 %v987, %v983
        %v1276 = vpack.c.b16 %v988, %v984
        %v1277 = vpack.c.b16 %v989, %v985
        %v1278 = vpack.c.b16 %v994, %v990
        %v1279 = vpack.c.b16 %v995, %v991
        %v1280 = vpack.c.b16 %v996, %v992
        %v1281 = vpack.c.b16 %v997, %v993
        %v1282 = vpack.c.b16 %v1002, %v998
        %v1283 = vpack.c.b16 %v1003, %v999
        %v1284 = vpack.c.b16 %v1004, %v1000
        %v1285 = vpack.c.b16 %v1005, %v1001
        %v1286 = vpack.c.b16 %v1010, %v1006
        %v1287 = vpack.c.b16 %v1011, %v1007
        %v1288 = vpack.c.b16 %v1012, %v1008
        %v1289 = vpack.c.b16 %v1013, %v1009
        %v1290 = vpack.c.b16 %v1018, %v1014
        %v1291 = vpack.c.b16 %v1019, %v1015
        %v1292 = vpack.c.b16 %v1020, %v1016
        %v1293 = vpack.c.b16 %v1021, %v1017
        %v1294 = vpack.c.b16 %v1026, %v1022
        %v1295 = vpack.c.b16 %v1027, %v1023
        %v1296 = vpack.c.b16 %v1028, %v1024
        %v1297 = vpack.c.b16 %v1029, %v1025
        %v1298 = vpack.c.b16 %v1034, %v1030
        %v1299 = vpack.c.b16 %v1035, %v1031
        %v1300 = vpack.c.b16 %v1036, %v1032
        %v1301 = vpack.c.b16 %v1037, %v1033
        %v1302 = vpack.c.b16 %v1042, %v1038
        %v1303 = vpack.c.b16 %v1043, %v1039
        %v1304 = vpack.c.b16 %v1044, %v1040
        %v1305 = vpack.c.b16 %v1045, %v1041
        %v1306 = vpack.c.b16 %v1050, %v1046
        %v1307 = vpack.c.b16 %v1051, %v1047
        %v1308 = vpack.c.b16 %v1052, %v1048
        %v1309 = vpack.c.b16 %v1053, %v1049
        %v1310 = vpack.c.b16 %v1058, %v1054
        %v1311 = vpack.c.b16 %v1059, %v1055
        %v1312 = vpack.c.b16 %v1060, %v1056
        %v1313 = vpack.c.b16 %v1061, %v1057
        %v1314 = vpack.c.b16 %v1066, %v1062
        %v1315 = vpack.c.b16 %v1067, %v1063
        %v1316 = vpack.c.b16 %v1068, %v1064
        %v1317 = vpack.c.b16 %v1069, %v1065
        %v1318 = vpack.c.b16 %v1074, %v1070
        %v1319 = vpack.c.b16 %v1075, %v1071
        %v1320 = vpack.c.b16 %v1076, %v1072
        %v1321 = vpack.c.b16 %v1077, %v1073
        %v1322 = vpack.c.b16 %v1082, %v1078
        %v1323 = vpack.c.b16 %v1083, %v1079
        %v1324 = vpack.c.b16 %v1084, %v1080
        %v1325 = vpack.c.b16 %v1085, %v1081
        %v1326 = vpack.c.b16 %v1090, %v1086
        %v1327 = vpack.c.b16 %v1091, %v1087
        %v1328 = vpack.c.b16 %v1092, %v1088
        %v1329 = vpack.c.b16 %v1093, %v1089
        %v1330 = vpack.c.b16 %v1098, %v1094
        %v1331 = vpack.c.b16 %v1099, %v1095
        %v1332 = vpack.c.b16 %v1100, %v1096
        %v1333 = vpack.c.b16 %v1101, %v1097
        %v1334 = vpack.c.b16 %v1106, %v1102
        %v1335 = vpack.c.b16 %v1107, %v1103
        %v1336 = vpack.c.b16 %v1108, %v1104
        %v1337 = vpack.c.b16 %v1109, %v1105
        %v1338 = vpack.c.b16 %v1114, %v1110
        %v1339 = vpack.c.b16 %v1115, %v1111
        %v1340 = vpack.c.b16 %v1116, %v1112
        %v1341 = vpack.c.b16 %v1117, %v1113
        %v1342 = vpack.c.b16 %v1122, %v1118
        %v1343 = vpack.c.b16 %v1123, %v1119
        %v1344 = vpack.c.b16 %v1124, %v1120
        %v1345 = vpack.c.b16 %v1125, %v1121
        %v1346 = vpack.c.b16 %v1130, %v1126
        %v1347 = vpack.c.b16 %v1131, %v1127
        %v1348 = vpack.c.b16 %v1132, %v1128
        %v1349 = vpack.c.b16 %v1133, %v1129
        %v1350 = vpack.c.b16 %v1138, %v1134
        %v1351 = vpack.c.b16 %v1139, %v1135
        %v1352 = vpack.c.b16 %v1140, %v1136
        %v1353 = vpack.c.b16 %v1141, %v1137
        %v1354 = vpack.c.b16 %v1146, %v1142
        %v1355 = vpack.c.b16 %v1147, %v1143
        %v1356 = vpack.c.b16 %v1148, %v1144
        %v1357 = vpack.c.b16 %v1149, %v1145
        %v1358 = vpack.c.b16 %v1154, %v1150
        %v1359 = vpack.c.b16 %v1155, %v1151
        %v1360 = vpack.c.b16 %v1156, %v1152
        %v1361 = vpack.c.b16 %v1157, %v1153
        %v1362 = vpack.c.b16 %v1162, %v1158
        %v1363 = vpack.c.b16 %v1163, %v1159
        %v1364 = vpack.c.b16 %v1164, %v1160
        %v1365 = vpack.c.b16 %v1165, %v1161
        %v1366 = vpack.c.b16 %v1170, %v1166
        %v1367 = vpack.c.b16 %v1171, %v1167
        %v1368 = vpack.c.b16 %v1172, %v1168
        %v1369 = vpack.c.b16 %v1173, %v1169
        %vm1566 = vcmask 130048
        %v1568 = vsel %vm1566, %v579, 0
        %1570 = vmatprep.subr.bf16.mxu0 %v1175
        %1571 = vmatpush1.bf16.msra.mxu0 %v1174
        %1572 = vmatprep.subr.bf16.mxu0 %v1179
        %1573 = vmatpush1.bf16.msra.mxu0 %v1178
        %1574 = vmatprep.subr.bf16.mxu0 %v1183
        %1575 = vmatpush1.bf16.msra.mxu0 %v1182
        %1576 = vmatprep.subr.bf16.mxu0 %v1187
        %1577 = vmatpush1.bf16.msra.mxu0 %v1186
        %1578 = vmatprep.subr.bf16.mxu0 %v1191
        %1579 = vmatpush1.bf16.msra.mxu0 %v1190
        %1580 = vmatprep.subr.bf16.mxu0 %v1195
        %1581 = vmatpush1.bf16.msra.mxu0 %v1194
        %1582 = vmatprep.subr.bf16.mxu0 %v1199
        %1583 = vmatpush1.bf16.msra.mxu0 %v1198
        %1584 = vmatprep.subr.bf16.mxu0 %v1203
        %1585 = vmatpush1.bf16.msra.mxu0 %v1202
        %1586 = vmatprep.subr.bf16.mxu0 %v1207
        %1587 = vmatpush1.bf16.msra.mxu0 %v1206
        %1588 = vmatprep.subr.bf16.mxu0 %v1211
        %1589 = vmatpush1.bf16.msra.mxu0 %v1210
        %1590 = vmatprep.subr.bf16.mxu0 %v1215
        %1591 = vmatpush1.bf16.msra.mxu0 %v1214
        %1592 = vmatprep.subr.bf16.mxu0 %v1219
        %1593 = vmatpush1.bf16.msra.mxu0 %v1218
        %1594 = vmatprep.subr.bf16.mxu0 %v1223
        %1595 = vmatpush1.bf16.msra.mxu0 %v1222
        %1596 = vmatprep.subr.bf16.mxu0 %v1227
        %1597 = vmatpush1.bf16.msra.mxu0 %v1226
        %1598 = vmatprep.subr.bf16.mxu0 %v1231
        %1599 = vmatpush1.bf16.msra.mxu0 %v1230
        %1600 = vmatprep.subr.bf16.mxu0 %v1235
        %1601 = vmatpush1.bf16.msra.mxu0 %v1234
        %1602 = vmatprep.mubr.bf16.mxu0 %v574
        %1603 = vmatmul.mubr.bf16.gmra.mrb[0].mxu0 %v573
        %v1604 = vpop.f32.mrb[0].mxu0
        %v1605 = vadd.f32 %v545, %v1604
        %v1606 = vpop.f32.mrb[0].mxu0
        %v1607 = vadd.f32 %v549, %v1606
        %v1608 = vpop.f32.mrb[0].mxu0
        %v1609 = vpop.f32.mrb[0].mxu0
        %1610 = vdwg.mxu0
        %1611 = vmatprep.subr.bf16.mxu0 %v1239
        %1612 = vmatpush1.bf16.msra.mxu0 %v1238
        %1613 = vmatprep.subr.bf16.mxu0 %v1243
        %1614 = vmatpush1.bf16.msra.mxu0 %v1242
        %1615 = vmatprep.subr.bf16.mxu0 %v1247
        %1616 = vmatpush1.bf16.msra.mxu0 %v1246
        %1617 = vmatprep.subr.bf16.mxu0 %v1251
        %1618 = vmatpush1.bf16.msra.mxu0 %v1250
        %1619 = vmatprep.subr.bf16.mxu0 %v1255
        %1620 = vmatpush1.bf16.msra.mxu0 %v1254
        %1621 = vmatprep.subr.bf16.mxu0 %v1259
        %1622 = vmatpush1.bf16.msra.mxu0 %v1258
        %1623 = vmatprep.subr.bf16.mxu0 %v1263
        %1624 = vmatpush1.bf16.msra.mxu0 %v1262
        %1625 = vmatprep.subr.bf16.mxu0 %v1267
        %1626 = vmatpush1.bf16.msra.mxu0 %v1266
        %1627 = vmatprep.subr.bf16.mxu0 %v1271
        %1628 = vmatpush1.bf16.msra.mxu0 %v1270
        %1629 = vmatprep.subr.bf16.mxu0 %v1275
        %1630 = vmatpush1.bf16.msra.mxu0 %v1274
        %1631 = vmatprep.subr.bf16.mxu0 %v1279
        %1632 = vmatpush1.bf16.msra.mxu0 %v1278
        %1633 = vmatprep.subr.bf16.mxu0 %v1283
        %1634 = vmatpush1.bf16.msra.mxu0 %v1282
        %1635 = vmatprep.subr.bf16.mxu0 %v1287
        %1636 = vmatpush1.bf16.msra.mxu0 %v1286
        %1637 = vmatprep.subr.bf16.mxu0 %v1291
        %1638 = vmatpush1.bf16.msra.mxu0 %v1290
        %1639 = vmatprep.subr.bf16.mxu0 %v1295
        %1640 = vmatpush1.bf16.msra.mxu0 %v1294
        %1641 = vmatprep.subr.bf16.mxu0 %v1299
        %1642 = vmatpush1.bf16.msra.mxu0 %v1298
        %1643 = vmatprep.mubr.bf16.mxu0 %v576
        %1644 = vmatmul.mubr.bf16.gmra.mrb[0].mxu0 %v575
        %v1645 = vpop.f32.mrb[0].mxu0
        %v1646 = vadd.f32 %v1605, %v1645
        %v1647 = vpop.f32.mrb[0].mxu0
        %v1648 = vadd.f32 %v1607, %v1647
        %v1649 = vpop.f32.mrb[0].mxu0
        %v1650 = vpop.f32.mrb[0].mxu0
        %1651 = vdwg.mxu0
        %1652 = vmatprep.subr.bf16.mxu0 %v1303
        %1653 = vmatpush1.bf16.msra.mxu0 %v1302
        %1654 = vmatprep.subr.bf16.mxu0 %v1307
        %1655 = vmatpush1.bf16.msra.mxu0 %v1306
        %1656 = vmatprep.subr.bf16.mxu0 %v1311
        %1657 = vmatpush1.bf16.msra.mxu0 %v1310
        %1658 = vmatprep.subr.bf16.mxu0 %v1315
        %1659 = vmatpush1.bf16.msra.mxu0 %v1314
        %1660 = vmatprep.subr.bf16.mxu0 %v1319
        %1661 = vmatpush1.bf16.msra.mxu0 %v1318
        %1662 = vmatprep.subr.bf16.mxu0 %v1323
        %1663 = vmatpush1.bf16.msra.mxu0 %v1322
        %1664 = vmatprep.subr.bf16.mxu0 %v1327
        %1665 = vmatpush1.bf16.msra.mxu0 %v1326
        %1666 = vmatprep.subr.bf16.mxu0 %v1331
        %1667 = vmatpush1.bf16.msra.mxu0 %v1330
        %1668 = vmatprep.subr.bf16.mxu0 %v1335
        %1669 = vmatpush1.bf16.msra.mxu0 %v1334
        %1670 = vmatprep.subr.bf16.mxu0 %v1339
        %1671 = vmatpush1.bf16.msra.mxu0 %v1338
        %1672 = vmatprep.subr.bf16.mxu0 %v1343
        %1673 = vmatpush1.bf16.msra.mxu0 %v1342
        %1674 = vmatprep.subr.bf16.mxu0 %v1347
        %1675 = vmatpush1.bf16.msra.mxu0 %v1346
        %1676 = vmatprep.subr.bf16.mxu0 %v1351
        %1677 = vmatpush1.bf16.msra.mxu0 %v1350
        %1678 = vmatprep.subr.bf16.mxu0 %v1355
        %1679 = vmatpush1.bf16.msra.mxu0 %v1354
        %1680 = vmatprep.subr.bf16.mxu0 %v1359
        %1681 = vmatpush1.bf16.msra.mxu0 %v1358
        %1682 = vmatprep.subr.bf16.mxu0 %v1363
        %1683 = vmatpush1.bf16.msra.mxu0 %v1362
        %1684 = vmatprep.mubr.bf16.mxu0 %v578
        %1685 = vmatmul.mubr.bf16.gmra.mrb[0].mxu0 %v577
        %v1686 = vpop.f32.mrb[0].mxu0
        %v1687 = vadd.f32 %v1646, %v1686
        %v1688 = vpop.f32.mrb[0].mxu0
        %v1689 = vadd.f32 %v1648, %v1688
        %v1690 = vpop.f32.mrb[0].mxu0
        %v1691 = vpop.f32.mrb[0].mxu0
        %1692 = vdwg.mxu0
        %1693 = vmatprep.subr.bf16.mxu0 %v1367
        %1694 = vmatpush1.bf16.msra.mxu0 %v1366
        %1695 = vmatprep.subr.bf16.mxu0 0
        %1696 = vmatpush1.bf16.msra.mxu0 0
        %1697 = vmatprep.subr.bf16.mxu0 0
        %1698 = vmatpush1.bf16.msra.mxu0 0
        %1699 = vmatprep.subr.bf16.mxu0 0
        %1700 = vmatpush1.bf16.msra.mxu0 0
        %1701 = vmatprep.subr.bf16.mxu0 0
        %1702 = vmatpush1.bf16.msra.mxu0 0
        %1703 = vmatprep.subr.bf16.mxu0 0
        %1704 = vmatpush1.bf16.msra.mxu0 0
        %1705 = vmatprep.subr.bf16.mxu0 0
        %1706 = vmatpush1.bf16.msra.mxu0 0
        %1707 = vmatprep.subr.bf16.mxu0 0
        %1708 = vmatpush1.bf16.msra.mxu0 0
        %1709 = vmatprep.subr.bf16.mxu0 0
        %1710 = vmatpush1.bf16.msra.mxu0 0
        %1711 = vmatprep.subr.bf16.mxu0 0
        %1712 = vmatpush1.bf16.msra.mxu0 0
        %1713 = vmatprep.subr.bf16.mxu0 0
        %1714 = vmatpush1.bf16.msra.mxu0 0
        %1715 = vmatprep.subr.bf16.mxu0 0
        %1716 = vmatpush1.bf16.msra.mxu0 0
        %1717 = vmatprep.subr.bf16.mxu0 0
        %1718 = vmatpush1.bf16.msra.mxu0 0
        %1719 = vmatprep.subr.bf16.mxu0 0
        %1720 = vmatpush1.bf16.msra.mxu0 0
        %1721 = vmatprep.subr.bf16.mxu0 0
        %1722 = vmatpush1.bf16.msra.mxu0 0
        %1723 = vmatprep.subr.bf16.mxu0 0
        %1724 = vmatpush1.bf16.msra.mxu0 0
        %1725 = vmatprep.mubr.bf16.mxu0 0
        %1726 = vmatmul.mubr.bf16.gmra.mrb[0].mxu0 %v1568
        %v1727 = vpop.f32.mrb[0].mxu0
        %v1728 = vadd.f32 %v1687, %v1727
        %v1729 = vpop.f32.mrb[0].mxu0
        %v1730 = vadd.f32 %v1689, %v1729
        %v1731 = vpop.f32.mrb[0].mxu0
        %v1732 = vpop.f32.mrb[0].mxu0
        %1733 = vdwg.mxu0
        %1734 = vmatprep.subr.bf16.mxu0 %v1177
        %1735 = vmatpush1.bf16.msra.mxu0 %v1176
        %1736 = vmatprep.subr.bf16.mxu0 %v1181
        %1737 = vmatpush1.bf16.msra.mxu0 %v1180
        %1738 = vmatprep.subr.bf16.mxu0 %v1185
        %1739 = vmatpush1.bf16.msra.mxu0 %v1184
        %1740 = vmatprep.subr.bf16.mxu0 %v1189
        %1741 = vmatpush1.bf16.msra.mxu0 %v1188
        %1742 = vmatprep.subr.bf16.mxu0 %v1193
        %1743 = vmatpush1.bf16.msra.mxu0 %v1192
        %1744 = vmatprep.subr.bf16.mxu0 %v1197
        %1745 = vmatpush1.bf16.msra.mxu0 %v1196
        %1746 = vmatprep.subr.bf16.mxu0 %v1201
        %1747 = vmatpush1.bf16.msra.mxu0 %v1200
        %1748 = vmatprep.subr.bf16.mxu0 %v1205
        %1749 = vmatpush1.bf16.msra.mxu0 %v1204
        %1750 = vmatprep.subr.bf16.mxu0 %v1209
        %1751 = vmatpush1.bf16.msra.mxu0 %v1208
        %1752 = vmatprep.subr.bf16.mxu0 %v1213
        %1753 = vmatpush1.bf16.msra.mxu0 %v1212
        %1754 = vmatprep.subr.bf16.mxu0 %v1217
        %1755 = vmatpush1.bf16.msra.mxu0 %v1216
        %1756 = vmatprep.subr.bf16.mxu0 %v1221
        %1757 = vmatpush1.bf16.msra.mxu0 %v1220
        %1758 = vmatprep.subr.bf16.mxu0 %v1225
        %1759 = vmatpush1.bf16.msra.mxu0 %v1224
        %1760 = vmatprep.subr.bf16.mxu0 %v1229
        %1761 = vmatpush1.bf16.msra.mxu0 %v1228
        %1762 = vmatprep.subr.bf16.mxu0 %v1233
        %1763 = vmatpush1.bf16.msra.mxu0 %v1232
        %1764 = vmatprep.subr.bf16.mxu0 %v1237
        %1765 = vmatpush1.bf16.msra.mxu0 %v1236
        %1766 = vmatprep.mubr.bf16.mxu0 %v574
        %1767 = vmatmul.mubr.bf16.gmra.mrb[0].mxu0 %v573
        %v1768 = vpop.f32.mrb[0].mxu0
        %v1769 = vadd.f32 %v553, %v1768
        %v1770 = vpop.f32.mrb[0].mxu0
        %v1771 = vadd.f32 %v557, %v1770
        %v1772 = vpop.f32.mrb[0].mxu0
        %v1773 = vpop.f32.mrb[0].mxu0
        %1774 = vdwg.mxu0
        %1775 = vmatprep.subr.bf16.mxu0 %v1241
        %1776 = vmatpush1.bf16.msra.mxu0 %v1240
        %1777 = vmatprep.subr.bf16.mxu0 %v1245
        %1778 = vmatpush1.bf16.msra.mxu0 %v1244
        %1779 = vmatprep.subr.bf16.mxu0 %v1249
        %1780 = vmatpush1.bf16.msra.mxu0 %v1248
        %1781 = vmatprep.subr.bf16.mxu0 %v1253
        %1782 = vmatpush1.bf16.msra.mxu0 %v1252
        %1783 = vmatprep.subr.bf16.mxu0 %v1257
        %1784 = vmatpush1.bf16.msra.mxu0 %v1256
        %1785 = vmatprep.subr.bf16.mxu0 %v1261
        %1786 = vmatpush1.bf16.msra.mxu0 %v1260
        %1787 = vmatprep.subr.bf16.mxu0 %v1265
        %1788 = vmatpush1.bf16.msra.mxu0 %v1264
        %1789 = vmatprep.subr.bf16.mxu0 %v1269
        %1790 = vmatpush1.bf16.msra.mxu0 %v1268
        %1791 = vmatprep.subr.bf16.mxu0 %v1273
        %1792 = vmatpush1.bf16.msra.mxu0 %v1272
        %1793 = vmatprep.subr.bf16.mxu0 %v1277
        %1794 = vmatpush1.bf16.msra.mxu0 %v1276
        %1795 = vmatprep.subr.bf16.mxu0 %v1281
        %1796 = vmatpush1.bf16.msra.mxu0 %v1280
        %1797 = vmatprep.subr.bf16.mxu0 %v1285
        %1798 = vmatpush1.bf16.msra.mxu0 %v1284
        %1799 = vmatprep.subr.bf16.mxu0 %v1289
        %1800 = vmatpush1.bf16.msra.mxu0 %v1288
        %1801 = vmatprep.subr.bf16.mxu0 %v1293
        %1802 = vmatpush1.bf16.msra.mxu0 %v1292
        %1803 = vmatprep.subr.bf16.mxu0 %v1297
        %1804 = vmatpush1.bf16.msra.mxu0 %v1296
        %1805 = vmatprep.subr.bf16.mxu0 %v1301
        %1806 = vmatpush1.bf16.msra.mxu0 %v1300
        %1807 = vmatprep.mubr.bf16.mxu0 %v576
        %1808 = vmatmul.mubr.bf16.gmra.mrb[0].mxu0 %v575
        %v1809 = vpop.f32.mrb[0].mxu0
        %v1810 = vadd.f32 %v1769, %v1809
        %v1811 = vpop.f32.mrb[0].mxu0
        %v1812 = vadd.f32 %v1771, %v1811
        %v1813 = vpop.f32.mrb[0].mxu0
        %v1814 = vpop.f32.mrb[0].mxu0
        %1815 = vdwg.mxu0
        %1816 = vmatprep.subr.bf16.mxu0 %v1305
        %1817 = vmatpush1.bf16.msra.mxu0 %v1304
        %1818 = vmatprep.subr.bf16.mxu0 %v1309
        %1819 = vmatpush1.bf16.msra.mxu0 %v1308
        %1820 = vmatprep.subr.bf16.mxu0 %v1313
        %1821 = vmatpush1.bf16.msra.mxu0 %v1312
        %1822 = vmatprep.subr.bf16.mxu0 %v1317
        %1823 = vmatpush1.bf16.msra.mxu0 %v1316
        %1824 = vmatprep.subr.bf16.mxu0 %v1321
        %1825 = vmatpush1.bf16.msra.mxu0 %v1320
        %1826 = vmatprep.subr.bf16.mxu0 %v1325
        %1827 = vmatpush1.bf16.msra.mxu0 %v1324
        %1828 = vmatprep.subr.bf16.mxu0 %v1329
        %1829 = vmatpush1.bf16.msra.mxu0 %v1328
        %1830 = vmatprep.subr.bf16.mxu0 %v1333
        %1831 = vmatpush1.bf16.msra.mxu0 %v1332
        %1832 = vmatprep.subr.bf16.mxu0 %v1337
        %1833 = vmatpush1.bf16.msra.mxu0 %v1336
        %1834 = vmatprep.subr.bf16.mxu0 %v1341
        %1835 = vmatpush1.bf16.msra.mxu0 %v1340
        %1836 = vmatprep.subr.bf16.mxu0 %v1345
        %1837 = vmatpush1.bf16.msra.mxu0 %v1344
        %1838 = vmatprep.subr.bf16.mxu0 %v1349
        %1839 = vmatpush1.bf16.msra.mxu0 %v1348
        %1840 = vmatprep.subr.bf16.mxu0 %v1353
        %1841 = vmatpush1.bf16.msra.mxu0 %v1352
        %1842 = vmatprep.subr.bf16.mxu0 %v1357
        %1843 = vmatpush1.bf16.msra.mxu0 %v1356
        %1844 = vmatprep.subr.bf16.mxu0 %v1361
        %1845 = vmatpush1.bf16.msra.mxu0 %v1360
        %1846 = vmatprep.subr.bf16.mxu0 %v1365
        %1847 = vmatpush1.bf16.msra.mxu0 %v1364
        %1848 = vmatprep.mubr.bf16.mxu0 %v578
        %1849 = vmatmul.mubr.bf16.gmra.mrb[0].mxu0 %v577
        %v1850 = vpop.f32.mrb[0].mxu0
        %v1851 = vadd.f32 %v1810, %v1850
        %v1852 = vpop.f32.mrb[0].mxu0
        %v1853 = vadd.f32 %v1812, %v1852
        %v1854 = vpop.f32.mrb[0].mxu0
        %v1855 = vpop.f32.mrb[0].mxu0
        %1856 = vdwg.mxu0
        %1857 = vmatprep.subr.bf16.mxu0 %v1369
        %1858 = vmatpush1.bf16.msra.mxu0 %v1368
        %1859 = vmatprep.subr.bf16.mxu0 0
        %1860 = vmatpush1.bf16.msra.mxu0 0
        %1861 = vmatprep.subr.bf16.mxu0 0
        %1862 = vmatpush1.bf16.msra.mxu0 0
        %1863 = vmatprep.subr.bf16.mxu0 0
        %1864 = vmatpush1.bf16.msra.mxu0 0
        %1865 = vmatprep.subr.bf16.mxu0 0
        %1866 = vmatpush1.bf16.msra.mxu0 0
        %1867 = vmatprep.subr.bf16.mxu0 0
        %1868 = vmatpush1.bf16.msra.mxu0 0
        %1869 = vmatprep.subr.bf16.mxu0 0
        %1870 = vmatpush1.bf16.msra.mxu0 0
        %1871 = vmatprep.subr.bf16.mxu0 0
        %1872 = vmatpush1.bf16.msra.mxu0 0
        %1873 = vmatprep.subr.bf16.mxu0 0
        %1874 = vmatpush1.bf16.msra.mxu0 0
        %1875 = vmatprep.subr.bf16.mxu0 0
        %1876 = vmatpush1.bf16.msra.mxu0 0
        %1877 = vmatprep.subr.bf16.mxu0 0
        %1878 = vmatpush1.bf16.msra.mxu0 0
        %1879 = vmatprep.subr.bf16.mxu0 0
        %1880 = vmatpush1.bf16.msra.mxu0 0
        %1881 = vmatprep.subr.bf16.mxu0 0
        %1882 = vmatpush1.bf16.msra.mxu0 0
        %1883 = vmatprep.subr.bf16.mxu0 0
        %1884 = vmatpush1.bf16.msra.mxu0 0
        %1885 = vmatprep.subr.bf16.mxu0 0
        %1886 = vmatpush1.bf16.msra.mxu0 0
        %1887 = vmatprep.subr.bf16.mxu0 0
        %1888 = vmatpush1.bf16.msra.mxu0 0
        %1889 = vmatprep.mubr.bf16.mxu0 0
        %1890 = vmatmul.mubr.bf16.gmra.mrb[0].mxu0 %v1568
        %v1891 = vpop.f32.mrb[0].mxu0
        %v1892 = vadd.f32 %v1851, %v1891
        %v1893 = vpop.f32.mrb[0].mxu0
        %v1894 = vadd.f32 %v1853, %v1893
        %v1895 = vpop.f32.mrb[0].mxu0
        %v1896 = vpop.f32.mrb[0].mxu0
        %1897 = vdwg.mxu0
        %v1898 = vmax.f32 %v1728, 0.0
        %v1899 = vmax.f32 %v1730, 0.0
        %v1900 = vmax.f32 %v1892, 0.0
        %v1901 = vmax.f32 %v1894, 0.0
        %v1902 = vpack.c.bf16 %v1898, %v1898
        %v1903 = vpack.c.bf16 %v1899, %v1899
        %v1904 = vpack.c.bf16 %v1900, %v1900
        %v1905 = vpack.c.bf16 %v1901, %v1901
        %v1906 = vld [vmem:[#allocation7] sm:$0xff]
        %v1907 = vld [vmem:[#allocation7 + $0x8] sm:$0xff]
        %v1908 = vld [vmem:[#allocation7 + $0x10] sm:$0xff]
        %v1909 = vld [vmem:[#allocation7 + $0x18] sm:$0xff]
        %v1910 = vld [vmem:[#allocation7 + $0x20] sm:$0xff]
        %v1911 = vld [vmem:[#allocation7 + $0x28] sm:$0xff]
        %v1912 = vld [vmem:[#allocation7 + $0x30] sm:$0xff]
        %v1913 = vld [vmem:[#allocation7 + $0x38] sm:$0xff]
        %v1914 = vld [vmem:[#allocation7 + $0x40] sm:$0xff]
        %v1915 = vld [vmem:[#allocation7 + $0x48] sm:$0xff]
        %v1916 = vld [vmem:[#allocation7 + $0x50] sm:$0xff]
        %v1917 = vld [vmem:[#allocation7 + $0x58] sm:$0xff]
        %v1918 = vld [vmem:[#allocation7 + $0x60] sm:$0xff]
        %v1919 = vld [vmem:[#allocation7 + $0x68] sm:$0xff]
        %v1920 = vld [vmem:[#allocation7 + $0x70] sm:$0xff]
        %v1921 = vld [vmem:[#allocation7 + $0x78] sm:$0xff]
        %v1922 = vld [vmem:[#allocation7 + $0x80] sm:$0xff]
        %v1923 = vld [vmem:[#allocation7 + $0x88] sm:$0xff]
        %v1924 = vld [vmem:[#allocation7 + $0x90] sm:$0xff]
        %v1925 = vld [vmem:[#allocation7 + $0x98] sm:$0xff]
        %v1926 = vld [vmem:[#allocation7 + $0xa0] sm:$0xff]
        %v1927 = vld [vmem:[#allocation7 + $0xa8] sm:$0xff]
        %v1928 = vld [vmem:[#allocation7 + $0xb0] sm:$0xff]
        %v1929 = vld [vmem:[#allocation7 + $0xb8] sm:$0xff]
        %v1930 = vld [vmem:[#allocation7 + $0xc0] sm:$0xff]
        %v1931 = vld [vmem:[#allocation7 + $0xc8] sm:$0xff]
        %v1932 = vld [vmem:[#allocation7 + $0xd0] sm:$0xff]
        %v1933 = vld [vmem:[#allocation7 + $0xd8] sm:$0xff]
        %v1934 = vld [vmem:[#allocation7 + $0xe0] sm:$0xff]
        %v1935 = vld [vmem:[#allocation7 + $0xe8] sm:$0xff]
        %v1936 = vld [vmem:[#allocation7 + $0xf0] sm:$0xff]
        %v1937 = vld [vmem:[#allocation7 + $0xf8] sm:$0xff]
        %v1938 = vld [vmem:[#allocation7 + $0x100] sm:$0xff]
        %v1939 = vld [vmem:[#allocation7 + $0x108] sm:$0xff]
        %v1940 = vld [vmem:[#allocation7 + $0x110] sm:$0xff]
        %v1941 = vld [vmem:[#allocation7 + $0x118] sm:$0xff]
        %v1942 = vld [vmem:[#allocation7 + $0x120] sm:$0xff]
        %v1943 = vld [vmem:[#allocation7 + $0x128] sm:$0xff]
        %v1944 = vld [vmem:[#allocation7 + $0x130] sm:$0xff]
        %v1945 = vld [vmem:[#allocation7 + $0x138] sm:$0xff]
        %v1946 = vld [vmem:[#allocation7 + $0x140] sm:$0xff]
        %v1947 = vld [vmem:[#allocation7 + $0x148] sm:$0xff]
        %v1948 = vld [vmem:[#allocation7 + $0x150] sm:$0xff]
        %v1949 = vld [vmem:[#allocation7 + $0x158] sm:$0xff]
        %v1950 = vld [vmem:[#allocation7 + $0x160] sm:$0xff]
        %v1951 = vld [vmem:[#allocation7 + $0x168] sm:$0xff]
        %v1952 = vld [vmem:[#allocation7 + $0x170] sm:$0xff]
        %v1953 = vld [vmem:[#allocation7 + $0x178] sm:$0xff]
        %v1954 = vld [vmem:[#allocation7 + $0x180] sm:$0xff]
        %v1955 = vld [vmem:[#allocation7 + $0x188] sm:$0xff]
        %v1956 = vld [vmem:[#allocation7 + $0x190] sm:$0xff]
        %v1957 = vld [vmem:[#allocation7 + $0x198] sm:$0xff]
        %v1958 = vld [vmem:[#allocation7 + $0x1a0] sm:$0xff]
        %v1959 = vld [vmem:[#allocation7 + $0x1a8] sm:$0xff]
        %v1960 = vld [vmem:[#allocation7 + $0x1b0] sm:$0xff]
        %v1961 = vld [vmem:[#allocation7 + $0x1b8] sm:$0xff]
        %v1962 = vld [vmem:[#allocation7 + $0x1c0] sm:$0xff]
        %v1963 = vld [vmem:[#allocation7 + $0x1c8] sm:$0xff]
        %v1964 = vld [vmem:[#allocation7 + $0x1d0] sm:$0xff]
        %v1965 = vld [vmem:[#allocation7 + $0x1d8] sm:$0xff]
        %v1966 = vld [vmem:[#allocation7 + $0x1e0] sm:$0xff]
        %v1967 = vld [vmem:[#allocation7 + $0x1e8] sm:$0xff]
        %v1968 = vld [vmem:[#allocation7 + $0x1f0] sm:$0xff]
        %v1969 = vld [vmem:[#allocation7 + $0x1f8] sm:$0xff]
        %v1970 = vld [vmem:[#allocation7 + $0x200] sm:$0xff]
        %v1971 = vld [vmem:[#allocation7 + $0x208] sm:$0xff]
        %v1972 = vld [vmem:[#allocation7 + $0x210] sm:$0xff]
        %v1973 = vld [vmem:[#allocation7 + $0x218] sm:$0xff]
        %v1974 = vld [vmem:[#allocation7 + $0x220] sm:$0xff]
        %v1975 = vld [vmem:[#allocation7 + $0x228] sm:$0xff]
        %v1976 = vld [vmem:[#allocation7 + $0x230] sm:$0xff]
        %v1977 = vld [vmem:[#allocation7 + $0x238] sm:$0xff]
        %v1978 = vld [vmem:[#allocation7 + $0x240] sm:$0xff]
        %v1979 = vld [vmem:[#allocation7 + $0x248] sm:$0xff]
        %v1980 = vld [vmem:[#allocation7 + $0x250] sm:$0xff]
        %v1981 = vld [vmem:[#allocation7 + $0x258] sm:$0xff]
        %v1982 = vld [vmem:[#allocation7 + $0x260] sm:$0xff]
        %v1983 = vld [vmem:[#allocation7 + $0x268] sm:$0xff]
        %v1984 = vld [vmem:[#allocation7 + $0x270] sm:$0xff]
        %v1985 = vld [vmem:[#allocation7 + $0x278] sm:$0xff]
        %v1986 = vld [vmem:[#allocation7 + $0x280] sm:$0xff]
        %v1987 = vld [vmem:[#allocation7 + $0x288] sm:$0xff]
        %v1988 = vld [vmem:[#allocation7 + $0x290] sm:$0xff]
        %v1989 = vld [vmem:[#allocation7 + $0x298] sm:$0xff]
        %v1990 = vld [vmem:[#allocation7 + $0x2a0] sm:$0xff]
        %v1991 = vld [vmem:[#allocation7 + $0x2a8] sm:$0xff]
        %v1992 = vld [vmem:[#allocation7 + $0x2b0] sm:$0xff]
        %v1993 = vld [vmem:[#allocation7 + $0x2b8] sm:$0xff]
        %v1994 = vld [vmem:[#allocation7 + $0x2c0] sm:$0xff]
        %v1995 = vld [vmem:[#allocation7 + $0x2c8] sm:$0xff]
        %v1996 = vld [vmem:[#allocation7 + $0x2d0] sm:$0xff]
        %v1997 = vld [vmem:[#allocation7 + $0x2d8] sm:$0xff]
        %v1998 = vld [vmem:[#allocation7 + $0x2e0] sm:$0xff]
        %v1999 = vld [vmem:[#allocation7 + $0x2e8] sm:$0xff]
        %v2000 = vld [vmem:[#allocation7 + $0x2f0] sm:$0xff]
        %v2001 = vld [vmem:[#allocation7 + $0x2f8] sm:$0xff]
        %v2002 = vld [vmem:[#allocation7 + $0x300] sm:$0xff]
        %v2003 = vld [vmem:[#allocation7 + $0x308] sm:$0xff]
        %v2004 = vld [vmem:[#allocation7 + $0x310] sm:$0xff]
        %v2005 = vld [vmem:[#allocation7 + $0x318] sm:$0xff]
        %v2006 = vld [vmem:[#allocation7 + $0x320] sm:$0xff]
        %v2007 = vld [vmem:[#allocation7 + $0x328] sm:$0xff]
        %v2008 = vld [vmem:[#allocation7 + $0x330] sm:$0xff]
        %v2009 = vld [vmem:[#allocation7 + $0x338] sm:$0xff]
        %v2010 = vld [vmem:[#allocation7 + $0x340] sm:$0xff]
        %v2011 = vld [vmem:[#allocation7 + $0x348] sm:$0xff]
        %v2012 = vld [vmem:[#allocation7 + $0x350] sm:$0xff]
        %v2013 = vld [vmem:[#allocation7 + $0x358] sm:$0xff]
        %v2014 = vld [vmem:[#allocation7 + $0x360] sm:$0xff]
        %v2015 = vld [vmem:[#allocation7 + $0x368] sm:$0xff]
        %v2016 = vld [vmem:[#allocation7 + $0x370] sm:$0xff]
        %v2017 = vld [vmem:[#allocation7 + $0x378] sm:$0xff]
        %v2018 = vld [vmem:[#allocation7 + $0x380] sm:$0xff]
        %v2019 = vld [vmem:[#allocation7 + $0x388] sm:$0xff]
        %v2020 = vld [vmem:[#allocation7 + $0x390] sm:$0xff]
        %v2021 = vld [vmem:[#allocation7 + $0x398] sm:$0xff]
        %v2022 = vld [vmem:[#allocation7 + $0x3a0] sm:$0xff]
        %v2023 = vld [vmem:[#allocation7 + $0x3a8] sm:$0xff]
        %v2024 = vld [vmem:[#allocation7 + $0x3b0] sm:$0xff]
        %v2025 = vld [vmem:[#allocation7 + $0x3b8] sm:$0xff]
        %v2026 = vld [vmem:[#allocation7 + $0x3c0] sm:$0xff]
        %v2027 = vld [vmem:[#allocation7 + $0x3c8] sm:$0xff]
        %v2028 = vld [vmem:[#allocation7 + $0x3d0] sm:$0xff]
        %v2029 = vld [vmem:[#allocation7 + $0x3d8] sm:$0xff]
        %v2030 = vld [vmem:[#allocation7 + $0x3e0] sm:$0xff]
        %v2031 = vld [vmem:[#allocation7 + $0x3e8] sm:$0xff]
        %v2032 = vld [vmem:[#allocation7 + $0x3f0] sm:$0xff]
        %v2033 = vld [vmem:[#allocation7 + $0x3f8] sm:$0xff]
        %v2034 = vld [vmem:[%s4] sm:$0xf]
        %v2036 = vlaneseq
        %v2037 = vshrl.u32 %v2036, 7
        %v2038 = vsub.s32 0, %v2037
        %v2039 = vrot.slane %v2034, %v2038
        %v2040 = vlaneseq
        %v2041 = vshrl.u32 %v2040, 7
        %v2042 = vsub.s32 1, %v2041
        %v2043 = vrot.slane %v2034, %v2042
        %v2044 = vlaneseq
        %v2045 = vshrl.u32 %v2044, 7
        %v2046 = vsub.s32 2, %v2045
        %v2047 = vrot.slane %v2034, %v2046
        %v2048 = vlaneseq
        %v2049 = vshrl.u32 %v2048, 7
        %v2050 = vsub.s32 3, %v2049
        %v2051 = vrot.slane %v2034, %v2050
        %v2184 = vunpack.c.l.b16 %v1906
        %v2185 = vunpack.c.h.b16 %v1906
        %v2186 = vunpack.c.l.b16 %v1907
        %v2187 = vunpack.c.h.b16 %v1907
        %v2188 = vunpack.c.l.b16 %v1908
        %v2189 = vunpack.c.h.b16 %v1908
        %v2190 = vunpack.c.l.b16 %v1909
        %v2191 = vunpack.c.h.b16 %v1909
        %v2192 = vunpack.c.l.b16 %v1910
        %v2193 = vunpack.c.h.b16 %v1910
        %v2194 = vunpack.c.l.b16 %v1911
        %v2195 = vunpack.c.h.b16 %v1911
        %v2196 = vunpack.c.l.b16 %v1912
        %v2197 = vunpack.c.h.b16 %v1912
        %v2198 = vunpack.c.l.b16 %v1913
        %v2199 = vunpack.c.h.b16 %v1913
        %v2200 = vunpack.c.l.b16 %v1914
        %v2201 = vunpack.c.h.b16 %v1914
        %v2202 = vunpack.c.l.b16 %v1915
        %v2203 = vunpack.c.h.b16 %v1915
        %v2204 = vunpack.c.l.b16 %v1916
        %v2205 = vunpack.c.h.b16 %v1916
        %v2206 = vunpack.c.l.b16 %v1917
        %v2207 = vunpack.c.h.b16 %v1917
        %v2208 = vunpack.c.l.b16 %v1918
        %v2209 = vunpack.c.h.b16 %v1918
        %v2210 = vunpack.c.l.b16 %v1919
        %v2211 = vunpack.c.h.b16 %v1919
        %v2212 = vunpack.c.l.b16 %v1920
        %v2213 = vunpack.c.h.b16 %v1920
        %v2214 = vunpack.c.l.b16 %v1921
        %v2215 = vunpack.c.h.b16 %v1921
        %v2216 = vunpack.c.l.b16 %v1922
        %v2217 = vunpack.c.h.b16 %v1922
        %v2218 = vunpack.c.l.b16 %v1923
        %v2219 = vunpack.c.h.b16 %v1923
        %v2220 = vunpack.c.l.b16 %v1924
        %v2221 = vunpack.c.h.b16 %v1924
        %v2222 = vunpack.c.l.b16 %v1925
        %v2223 = vunpack.c.h.b16 %v1925
        %v2224 = vunpack.c.l.b16 %v1926
        %v2225 = vunpack.c.h.b16 %v1926
        %v2226 = vunpack.c.l.b16 %v1927
        %v2227 = vunpack.c.h.b16 %v1927
        %v2228 = vunpack.c.l.b16 %v1928
        %v2229 = vunpack.c.h.b16 %v1928
        %v2230 = vunpack.c.l.b16 %v1929
        %v2231 = vunpack.c.h.b16 %v1929
        %v2232 = vunpack.c.l.b16 %v1930
        %v2233 = vunpack.c.h.b16 %v1930
        %v2234 = vunpack.c.l.b16 %v1931
        %v2235 = vunpack.c.h.b16 %v1931
        %v2236 = vunpack.c.l.b16 %v1932
        %v2237 = vunpack.c.h.b16 %v1932
        %v2238 = vunpack.c.l.b16 %v1933
        %v2239 = vunpack.c.h.b16 %v1933
        %v2240 = vunpack.c.l.b16 %v1934
        %v2241 = vunpack.c.h.b16 %v1934
        %v2242 = vunpack.c.l.b16 %v1935
        %v2243 = vunpack.c.h.b16 %v1935
        %v2244 = vunpack.c.l.b16 %v1936
        %v2245 = vunpack.c.h.b16 %v1936
        %v2246 = vunpack.c.l.b16 %v1937
        %v2247 = vunpack.c.h.b16 %v1937
        %v2248 = vunpack.c.l.b16 %v1938
        %v2249 = vunpack.c.h.b16 %v1938
        %v2250 = vunpack.c.l.b16 %v1939
        %v2251 = vunpack.c.h.b16 %v1939
        %v2252 = vunpack.c.l.b16 %v1940
        %v2253 = vunpack.c.h.b16 %v1940
        %v2254 = vunpack.c.l.b16 %v1941
        %v2255 = vunpack.c.h.b16 %v1941
        %v2256 = vunpack.c.l.b16 %v1942
        %v2257 = vunpack.c.h.b16 %v1942
        %v2258 = vunpack.c.l.b16 %v1943
        %v2259 = vunpack.c.h.b16 %v1943
        %v2260 = vunpack.c.l.b16 %v1944
        %v2261 = vunpack.c.h.b16 %v1944
        %v2262 = vunpack.c.l.b16 %v1945
        %v2263 = vunpack.c.h.b16 %v1945
        %v2264 = vunpack.c.l.b16 %v1946
        %v2265 = vunpack.c.h.b16 %v1946
        %v2266 = vunpack.c.l.b16 %v1947
        %v2267 = vunpack.c.h.b16 %v1947
        %v2268 = vunpack.c.l.b16 %v1948
        %v2269 = vunpack.c.h.b16 %v1948
        %v2270 = vunpack.c.l.b16 %v1949
        %v2271 = vunpack.c.h.b16 %v1949
        %v2272 = vunpack.c.l.b16 %v1950
        %v2273 = vunpack.c.h.b16 %v1950
        %v2274 = vunpack.c.l.b16 %v1951
        %v2275 = vunpack.c.h.b16 %v1951
        %v2276 = vunpack.c.l.b16 %v1952
        %v2277 = vunpack.c.h.b16 %v1952
        %v2278 = vunpack.c.l.b16 %v1953
        %v2279 = vunpack.c.h.b16 %v1953
        %v2280 = vunpack.c.l.b16 %v1954
        %v2281 = vunpack.c.h.b16 %v1954
        %v2282 = vunpack.c.l.b16 %v1955
        %v2283 = vunpack.c.h.b16 %v1955
        %v2284 = vunpack.c.l.b16 %v1956
        %v2285 = vunpack.c.h.b16 %v1956
        %v2286 = vunpack.c.l.b16 %v1957
        %v2287 = vunpack.c.h.b16 %v1957
        %v2288 = vunpack.c.l.b16 %v1958
        %v2289 = vunpack.c.h.b16 %v1958
        %v2290 = vunpack.c.l.b16 %v1959
        %v2291 = vunpack.c.h.b16 %v1959
        %v2292 = vunpack.c.l.b16 %v1960
        %v2293 = vunpack.c.h.b16 %v1960
        %v2294 = vunpack.c.l.b16 %v1961
        %v2295 = vunpack.c.h.b16 %v1961
        %v2296 = vunpack.c.l.b16 %v1962
        %v2297 = vunpack.c.h.b16 %v1962
        %v2298 = vunpack.c.l.b16 %v1963
        %v2299 = vunpack.c.h.b16 %v1963
        %v2300 = vunpack.c.l.b16 %v1964
        %v2301 = vunpack.c.h.b16 %v1964
        %v2302 = vunpack.c.l.b16 %v1965
        %v2303 = vunpack.c.h.b16 %v1965
        %v2304 = vunpack.c.l.b16 %v1966
        %v2305 = vunpack.c.h.b16 %v1966
        %v2306 = vunpack.c.l.b16 %v1967
        %v2307 = vunpack.c.h.b16 %v1967
        %v2308 = vunpack.c.l.b16 %v1968
        %v2309 = vunpack.c.h.b16 %v1968
        %v2310 = vunpack.c.l.b16 %v1969
        %v2311 = vunpack.c.h.b16 %v1969
        %v2312 = vunpack.c.l.b16 %v1970
        %v2313 = vunpack.c.h.b16 %v1970
        %v2314 = vunpack.c.l.b16 %v1971
        %v2315 = vunpack.c.h.b16 %v1971
        %v2316 = vunpack.c.l.b16 %v1972
        %v2317 = vunpack.c.h.b16 %v1972
        %v2318 = vunpack.c.l.b16 %v1973
        %v2319 = vunpack.c.h.b16 %v1973
        %v2320 = vunpack.c.l.b16 %v1974
        %v2321 = vunpack.c.h.b16 %v1974
        %v2322 = vunpack.c.l.b16 %v1975
        %v2323 = vunpack.c.h.b16 %v1975
        %v2324 = vunpack.c.l.b16 %v1976
        %v2325 = vunpack.c.h.b16 %v1976
        %v2326 = vunpack.c.l.b16 %v1977
        %v2327 = vunpack.c.h.b16 %v1977
        %v2328 = vunpack.c.l.b16 %v1978
        %v2329 = vunpack.c.h.b16 %v1978
        %v2330 = vunpack.c.l.b16 %v1979
        %v2331 = vunpack.c.h.b16 %v1979
        %v2332 = vunpack.c.l.b16 %v1980
        %v2333 = vunpack.c.h.b16 %v1980
        %v2334 = vunpack.c.l.b16 %v1981
        %v2335 = vunpack.c.h.b16 %v1981
        %v2336 = vunpack.c.l.b16 %v1982
        %v2337 = vunpack.c.h.b16 %v1982
        %v2338 = vunpack.c.l.b16 %v1983
        %v2339 = vunpack.c.h.b16 %v1983
        %v2340 = vunpack.c.l.b16 %v1984
        %v2341 = vunpack.c.h.b16 %v1984
        %v2342 = vunpack.c.l.b16 %v1985
        %v2343 = vunpack.c.h.b16 %v1985
        %v2344 = vunpack.c.l.b16 %v1986
        %v2345 = vunpack.c.h.b16 %v1986
        %v2346 = vunpack.c.l.b16 %v1987
        %v2347 = vunpack.c.h.b16 %v1987
        %v2348 = vunpack.c.l.b16 %v1988
        %v2349 = vunpack.c.h.b16 %v1988
        %v2350 = vunpack.c.l.b16 %v1989
        %v2351 = vunpack.c.h.b16 %v1989
        %v2352 = vunpack.c.l.b16 %v1990
        %v2353 = vunpack.c.h.b16 %v1990
        %v2354 = vunpack.c.l.b16 %v1991
        %v2355 = vunpack.c.h.b16 %v1991
        %v2356 = vunpack.c.l.b16 %v1992
        %v2357 = vunpack.c.h.b16 %v1992
        %v2358 = vunpack.c.l.b16 %v1993
        %v2359 = vunpack.c.h.b16 %v1993
        %v2360 = vunpack.c.l.b16 %v1994
        %v2361 = vunpack.c.h.b16 %v1994
        %v2362 = vunpack.c.l.b16 %v1995
        %v2363 = vunpack.c.h.b16 %v1995
        %v2364 = vunpack.c.l.b16 %v1996
        %v2365 = vunpack.c.h.b16 %v1996
        %v2366 = vunpack.c.l.b16 %v1997
        %v2367 = vunpack.c.h.b16 %v1997
        %v2368 = vunpack.c.l.b16 %v1998
        %v2369 = vunpack.c.h.b16 %v1998
        %v2370 = vunpack.c.l.b16 %v1999
        %v2371 = vunpack.c.h.b16 %v1999
        %v2372 = vunpack.c.l.b16 %v2000
        %v2373 = vunpack.c.h.b16 %v2000
        %v2374 = vunpack.c.l.b16 %v2001
        %v2375 = vunpack.c.h.b16 %v2001
        %v2376 = vunpack.c.l.b16 %v2002
        %v2377 = vunpack.c.h.b16 %v2002
        %v2378 = vunpack.c.l.b16 %v2003
        %v2379 = vunpack.c.h.b16 %v2003
        %v2380 = vunpack.c.l.b16 %v2004
        %v2381 = vunpack.c.h.b16 %v2004
        %v2382 = vunpack.c.l.b16 %v2005
        %v2383 = vunpack.c.h.b16 %v2005
        %v2384 = vunpack.c.l.b16 %v2006
        %v2385 = vunpack.c.h.b16 %v2006
        %v2386 = vunpack.c.l.b16 %v2007
        %v2387 = vunpack.c.h.b16 %v2007
        %v2388 = vunpack.c.l.b16 %v2008
        %v2389 = vunpack.c.h.b16 %v2008
        %v2390 = vunpack.c.l.b16 %v2009
        %v2391 = vunpack.c.h.b16 %v2009
        %v2392 = vunpack.c.l.b16 %v2010
        %v2393 = vunpack.c.h.b16 %v2010
        %v2394 = vunpack.c.l.b16 %v2011
        %v2395 = vunpack.c.h.b16 %v2011
        %v2396 = vunpack.c.l.b16 %v2012
        %v2397 = vunpack.c.h.b16 %v2012
        %v2398 = vunpack.c.l.b16 %v2013
        %v2399 = vunpack.c.h.b16 %v2013
        %v2400 = vunpack.c.l.b16 %v2014
        %v2401 = vunpack.c.h.b16 %v2014
        %v2402 = vunpack.c.l.b16 %v2015
        %v2403 = vunpack.c.h.b16 %v2015
        %v2404 = vunpack.c.l.b16 %v2016
        %v2405 = vunpack.c.h.b16 %v2016
        %v2406 = vunpack.c.l.b16 %v2017
        %v2407 = vunpack.c.h.b16 %v2017
        %v2408 = vunpack.c.l.b16 %v2018
        %v2409 = vunpack.c.h.b16 %v2018
        %v2410 = vunpack.c.l.b16 %v2019
        %v2411 = vunpack.c.h.b16 %v2019
        %v2412 = vunpack.c.l.b16 %v2020
        %v2413 = vunpack.c.h.b16 %v2020
        %v2414 = vunpack.c.l.b16 %v2021
        %v2415 = vunpack.c.h.b16 %v2021
        %v2416 = vunpack.c.l.b16 %v2022
        %v2417 = vunpack.c.h.b16 %v2022
        %v2418 = vunpack.c.l.b16 %v2023
        %v2419 = vunpack.c.h.b16 %v2023
        %v2420 = vunpack.c.l.b16 %v2024
        %v2421 = vunpack.c.h.b16 %v2024
        %v2422 = vunpack.c.l.b16 %v2025
        %v2423 = vunpack.c.h.b16 %v2025
        %v2424 = vunpack.c.l.b16 %v2026
        %v2425 = vunpack.c.h.b16 %v2026
        %v2426 = vunpack.c.l.b16 %v2027
        %v2427 = vunpack.c.h.b16 %v2027
        %v2428 = vunpack.c.l.b16 %v2028
        %v2429 = vunpack.c.h.b16 %v2028
        %v2430 = vunpack.c.l.b16 %v2029
        %v2431 = vunpack.c.h.b16 %v2029
        %v2432 = vunpack.c.l.b16 %v2030
        %v2433 = vunpack.c.h.b16 %v2030
        %v2434 = vunpack.c.l.b16 %v2031
        %v2435 = vunpack.c.h.b16 %v2031
        %v2436 = vunpack.c.l.b16 %v2032
        %v2437 = vunpack.c.h.b16 %v2032
        %v2438 = vunpack.c.l.b16 %v2033
        %v2439 = vunpack.c.h.b16 %v2033
        %v2440 = vpack.c.b16 %v2188, %v2184
        %v2441 = vpack.c.b16 %v2189, %v2185
        %v2442 = vpack.c.b16 %v2190, %v2186
        %v2443 = vpack.c.b16 %v2191, %v2187
        %v2444 = vpack.c.b16 %v2196, %v2192
        %v2445 = vpack.c.b16 %v2197, %v2193
        %v2446 = vpack.c.b16 %v2198, %v2194
        %v2447 = vpack.c.b16 %v2199, %v2195
        %v2448 = vpack.c.b16 %v2204, %v2200
        %v2449 = vpack.c.b16 %v2205, %v2201
        %v2450 = vpack.c.b16 %v2206, %v2202
        %v2451 = vpack.c.b16 %v2207, %v2203
        %v2452 = vpack.c.b16 %v2212, %v2208
        %v2453 = vpack.c.b16 %v2213, %v2209
        %v2454 = vpack.c.b16 %v2214, %v2210
        %v2455 = vpack.c.b16 %v2215, %v2211
        %v2456 = vpack.c.b16 %v2220, %v2216
        %v2457 = vpack.c.b16 %v2221, %v2217
        %v2458 = vpack.c.b16 %v2222, %v2218
        %v2459 = vpack.c.b16 %v2223, %v2219
        %v2460 = vpack.c.b16 %v2228, %v2224
        %v2461 = vpack.c.b16 %v2229, %v2225
        %v2462 = vpack.c.b16 %v2230, %v2226
        %v2463 = vpack.c.b16 %v2231, %v2227
        %v2464 = vpack.c.b16 %v2236, %v2232
        %v2465 = vpack.c.b16 %v2237, %v2233
        %v2466 = vpack.c.b16 %v2238, %v2234
        %v2467 = vpack.c.b16 %v2239, %v2235
        %v2468 = vpack.c.b16 %v2244, %v2240
        %v2469 = vpack.c.b16 %v2245, %v2241
        %v2470 = vpack.c.b16 %v2246, %v2242
        %v2471 = vpack.c.b16 %v2247, %v2243
        %v2472 = vpack.c.b16 %v2252, %v2248
        %v2473 = vpack.c.b16 %v2253, %v2249
        %v2474 = vpack.c.b16 %v2254, %v2250
        %v2475 = vpack.c.b16 %v2255, %v2251
        %v2476 = vpack.c.b16 %v2260, %v2256
        %v2477 = vpack.c.b16 %v2261, %v2257
        %v2478 = vpack.c.b16 %v2262, %v2258
        %v2479 = vpack.c.b16 %v2263, %v2259
        %v2480 = vpack.c.b16 %v2268, %v2264
        %v2481 = vpack.c.b16 %v2269, %v2265
        %v2482 = vpack.c.b16 %v2270, %v2266
        %v2483 = vpack.c.b16 %v2271, %v2267
        %v2484 = vpack.c.b16 %v2276, %v2272
        %v2485 = vpack.c.b16 %v2277, %v2273
        %v2486 = vpack.c.b16 %v2278, %v2274
        %v2487 = vpack.c.b16 %v2279, %v2275
        %v2488 = vpack.c.b16 %v2284, %v2280
        %v2489 = vpack.c.b16 %v2285, %v2281
        %v2490 = vpack.c.b16 %v2286, %v2282
        %v2491 = vpack.c.b16 %v2287, %v2283
        %v2492 = vpack.c.b16 %v2292, %v2288
        %v2493 = vpack.c.b16 %v2293, %v2289
        %v2494 = vpack.c.b16 %v2294, %v2290
        %v2495 = vpack.c.b16 %v2295, %v2291
        %v2496 = vpack.c.b16 %v2300, %v2296
        %v2497 = vpack.c.b16 %v2301, %v2297
        %v2498 = vpack.c.b16 %v2302, %v2298
        %v2499 = vpack.c.b16 %v2303, %v2299
        %v2500 = vpack.c.b16 %v2308, %v2304
        %v2501 = vpack.c.b16 %v2309, %v2305
        %v2502 = vpack.c.b16 %v2310, %v2306
        %v2503 = vpack.c.b16 %v2311, %v2307
        %v2504 = vpack.c.b16 %v2316, %v2312
        %v2505 = vpack.c.b16 %v2317, %v2313
        %v2506 = vpack.c.b16 %v2318, %v2314
        %v2507 = vpack.c.b16 %v2319, %v2315
        %v2508 = vpack.c.b16 %v2324, %v2320
        %v2509 = vpack.c.b16 %v2325, %v2321
        %v2510 = vpack.c.b16 %v2326, %v2322
        %v2511 = vpack.c.b16 %v2327, %v2323
        %v2512 = vpack.c.b16 %v2332, %v2328
        %v2513 = vpack.c.b16 %v2333, %v2329
        %v2514 = vpack.c.b16 %v2334, %v2330
        %v2515 = vpack.c.b16 %v2335, %v2331
        %v2516 = vpack.c.b16 %v2340, %v2336
        %v2517 = vpack.c.b16 %v2341, %v2337
        %v2518 = vpack.c.b16 %v2342, %v2338
        %v2519 = vpack.c.b16 %v2343, %v2339
        %v2520 = vpack.c.b16 %v2348, %v2344
        %v2521 = vpack.c.b16 %v2349, %v2345
        %v2522 = vpack.c.b16 %v2350, %v2346
        %v2523 = vpack.c.b16 %v2351, %v2347
        %v2524 = vpack.c.b16 %v2356, %v2352
        %v2525 = vpack.c.b16 %v2357, %v2353
        %v2526 = vpack.c.b16 %v2358, %v2354
        %v2527 = vpack.c.b16 %v2359, %v2355
        %v2528 = vpack.c.b16 %v2364, %v2360
        %v2529 = vpack.c.b16 %v2365, %v2361
        %v2530 = vpack.c.b16 %v2366, %v2362
        %v2531 = vpack.c.b16 %v2367, %v2363
        %v2532 = vpack.c.b16 %v2372, %v2368
        %v2533 = vpack.c.b16 %v2373, %v2369
        %v2534 = vpack.c.b16 %v2374, %v2370
        %v2535 = vpack.c.b16 %v2375, %v2371
        %v2536 = vpack.c.b16 %v2380, %v2376
        %v2537 = vpack.c.b16 %v2381, %v2377
        %v2538 = vpack.c.b16 %v2382, %v2378
        %v2539 = vpack.c.b16 %v2383, %v2379
        %v2540 = vpack.c.b16 %v2388, %v2384
        %v2541 = vpack.c.b16 %v2389, %v2385
        %v2542 = vpack.c.b16 %v2390, %v2386
        %v2543 = vpack.c.b16 %v2391, %v2387
        %v2544 = vpack.c.b16 %v2396, %v2392
        %v2545 = vpack.c.b16 %v2397, %v2393
        %v2546 = vpack.c.b16 %v2398, %v2394
        %v2547 = vpack.c.b16 %v2399, %v2395
        %v2548 = vpack.c.b16 %v2404, %v2400
        %v2549 = vpack.c.b16 %v2405, %v2401
        %v2550 = vpack.c.b16 %v2406, %v2402
        %v2551 = vpack.c.b16 %v2407, %v2403
        %v2552 = vpack.c.b16 %v2412, %v2408
        %v2553 = vpack.c.b16 %v2413, %v2409
        %v2554 = vpack.c.b16 %v2414, %v2410
        %v2555 = vpack.c.b16 %v2415, %v2411
        %v2556 = vpack.c.b16 %v2420, %v2416
        %v2557 = vpack.c.b16 %v2421, %v2417
        %v2558 = vpack.c.b16 %v2422, %v2418
        %v2559 = vpack.c.b16 %v2423, %v2419
        %v2560 = vpack.c.b16 %v2428, %v2424
        %v2561 = vpack.c.b16 %v2429, %v2425
        %v2562 = vpack.c.b16 %v2430, %v2426
        %v2563 = vpack.c.b16 %v2431, %v2427
        %v2564 = vpack.c.b16 %v2436, %v2432
        %v2565 = vpack.c.b16 %v2437, %v2433
        %v2566 = vpack.c.b16 %v2438, %v2434
        %v2567 = vpack.c.b16 %v2439, %v2435
        %2696 = vmatprep.subr.bf16.mxu0 %v2441
        %2697 = vmatpush1.bf16.msra.mxu0 %v2440
        %2698 = vmatprep.subr.bf16.mxu0 %v2445
        %2699 = vmatpush1.bf16.msra.mxu0 %v2444
        %2700 = vmatprep.subr.bf16.mxu0 %v2449
        %2701 = vmatpush1.bf16.msra.mxu0 %v2448
        %2702 = vmatprep.subr.bf16.mxu0 %v2453
        %2703 = vmatpush1.bf16.msra.mxu0 %v2452
        %2704 = vmatprep.subr.bf16.mxu0 %v2457
        %2705 = vmatpush1.bf16.msra.mxu0 %v2456
        %2706 = vmatprep.subr.bf16.mxu0 %v2461
        %2707 = vmatpush1.bf16.msra.mxu0 %v2460
        %2708 = vmatprep.subr.bf16.mxu0 %v2465
        %2709 = vmatpush1.bf16.msra.mxu0 %v2464
        %2710 = vmatprep.subr.bf16.mxu0 %v2469
        %2711 = vmatpush1.bf16.msra.mxu0 %v2468
        %2712 = vmatprep.subr.bf16.mxu0 %v2473
        %2713 = vmatpush1.bf16.msra.mxu0 %v2472
        %2714 = vmatprep.subr.bf16.mxu0 %v2477
        %2715 = vmatpush1.bf16.msra.mxu0 %v2476
        %2716 = vmatprep.subr.bf16.mxu0 %v2481
        %2717 = vmatpush1.bf16.msra.mxu0 %v2480
        %2718 = vmatprep.subr.bf16.mxu0 %v2485
        %2719 = vmatpush1.bf16.msra.mxu0 %v2484
        %2720 = vmatprep.subr.bf16.mxu0 %v2489
        %2721 = vmatpush1.bf16.msra.mxu0 %v2488
        %2722 = vmatprep.subr.bf16.mxu0 %v2493
        %2723 = vmatpush1.bf16.msra.mxu0 %v2492
        %2724 = vmatprep.subr.bf16.mxu0 %v2497
        %2725 = vmatpush1.bf16.msra.mxu0 %v2496
        %2726 = vmatprep.subr.bf16.mxu0 %v2501
        %2727 = vmatpush1.bf16.msra.mxu0 %v2500
        %2728 = vmatprep.mubr.bf16.mxu0 %v1903
        %2729 = vmatmul.mubr.bf16.gmra.mrb[0].mxu0 %v1902
        %v2730 = vpop.f32.mrb[0].mxu0
        %v2731 = vadd.f32 %v2039, %v2730
        %v2732 = vpop.f32.mrb[0].mxu0
        %v2733 = vadd.f32 %v2043, %v2732
        %v2734 = vpop.f32.mrb[0].mxu0
        %v2735 = vpop.f32.mrb[0].mxu0
        %2736 = vdwg.mxu0
        %2737 = vmatprep.subr.bf16.mxu0 %v2505
        %2738 = vmatpush1.bf16.msra.mxu0 %v2504
        %2739 = vmatprep.subr.bf16.mxu0 %v2509
        %2740 = vmatpush1.bf16.msra.mxu0 %v2508
        %2741 = vmatprep.subr.bf16.mxu0 %v2513
        %2742 = vmatpush1.bf16.msra.mxu0 %v2512
        %2743 = vmatprep.subr.bf16.mxu0 %v2517
        %2744 = vmatpush1.bf16.msra.mxu0 %v2516
        %2745 = vmatprep.subr.bf16.mxu0 %v2521
        %2746 = vmatpush1.bf16.msra.mxu0 %v2520
        %2747 = vmatprep.subr.bf16.mxu0 %v2525
        %2748 = vmatpush1.bf16.msra.mxu0 %v2524
        %2749 = vmatprep.subr.bf16.mxu0 %v2529
        %2750 = vmatpush1.bf16.msra.mxu0 %v2528
        %2751 = vmatprep.subr.bf16.mxu0 %v2533
        %2752 = vmatpush1.bf16.msra.mxu0 %v2532
        %2753 = vmatprep.subr.bf16.mxu0 %v2537
        %2754 = vmatpush1.bf16.msra.mxu0 %v2536
        %2755 = vmatprep.subr.bf16.mxu0 %v2541
        %2756 = vmatpush1.bf16.msra.mxu0 %v2540
        %2757 = vmatprep.subr.bf16.mxu0 %v2545
        %2758 = vmatpush1.bf16.msra.mxu0 %v2544
        %2759 = vmatprep.subr.bf16.mxu0 %v2549
        %2760 = vmatpush1.bf16.msra.mxu0 %v2548
        %2761 = vmatprep.subr.bf16.mxu0 %v2553
        %2762 = vmatpush1.bf16.msra.mxu0 %v2552
        %2763 = vmatprep.subr.bf16.mxu0 %v2557
        %2764 = vmatpush1.bf16.msra.mxu0 %v2556
        %2765 = vmatprep.subr.bf16.mxu0 %v2561
        %2766 = vmatpush1.bf16.msra.mxu0 %v2560
        %2767 = vmatprep.subr.bf16.mxu0 %v2565
        %2768 = vmatpush1.bf16.msra.mxu0 %v2564
        %2769 = vmatprep.mubr.bf16.mxu0 %v1905
        %2770 = vmatmul.mubr.bf16.gmra.mrb[0].mxu0 %v1904
        %v2771 = vpop.f32.mrb[0].mxu0
        %v2772 = vadd.f32 %v2731, %v2771
        %v2773 = vpop.f32.mrb[0].mxu0
        %v2774 = vadd.f32 %v2733, %v2773
        %v2775 = vpop.f32.mrb[0].mxu0
        %v2776 = vpop.f32.mrb[0].mxu0
        %2777 = vdwg.mxu0
        %2778 = vmatprep.subr.bf16.mxu0 %v2443
        %2779 = vmatpush1.bf16.msra.mxu0 %v2442
        %2780 = vmatprep.subr.bf16.mxu0 %v2447
        %2781 = vmatpush1.bf16.msra.mxu0 %v2446
        %2782 = vmatprep.subr.bf16.mxu0 %v2451
        %2783 = vmatpush1.bf16.msra.mxu0 %v2450
        %2784 = vmatprep.subr.bf16.mxu0 %v2455
        %2785 = vmatpush1.bf16.msra.mxu0 %v2454
        %2786 = vmatprep.subr.bf16.mxu0 %v2459
        %2787 = vmatpush1.bf16.msra.mxu0 %v2458
        %2788 = vmatprep.subr.bf16.mxu0 %v2463
        %2789 = vmatpush1.bf16.msra.mxu0 %v2462
        %2790 = vmatprep.subr.bf16.mxu0 %v2467
        %2791 = vmatpush1.bf16.msra.mxu0 %v2466
        %2792 = vmatprep.subr.bf16.mxu0 %v2471
        %2793 = vmatpush1.bf16.msra.mxu0 %v2470
        %2794 = vmatprep.subr.bf16.mxu0 %v2475
        %2795 = vmatpush1.bf16.msra.mxu0 %v2474
        %2796 = vmatprep.subr.bf16.mxu0 %v2479
        %2797 = vmatpush1.bf16.msra.mxu0 %v2478
        %2798 = vmatprep.subr.bf16.mxu0 %v2483
        %2799 = vmatpush1.bf16.msra.mxu0 %v2482
        %2800 = vmatprep.subr.bf16.mxu0 %v2487
        %2801 = vmatpush1.bf16.msra.mxu0 %v2486
        %2802 = vmatprep.subr.bf16.mxu0 %v2491
        %2803 = vmatpush1.bf16.msra.mxu0 %v2490
        %2804 = vmatprep.subr.bf16.mxu0 %v2495
        %2805 = vmatpush1.bf16.msra.mxu0 %v2494
        %2806 = vmatprep.subr.bf16.mxu0 %v2499
        %2807 = vmatpush1.bf16.msra.mxu0 %v2498
        %2808 = vmatprep.subr.bf16.mxu0 %v2503
        %2809 = vmatpush1.bf16.msra.mxu0 %v2502
        %2810 = vmatprep.mubr.bf16.mxu0 %v1903
        %2811 = vmatmul.mubr.bf16.gmra.mrb[0].mxu0 %v1902
        %v2812 = vpop.f32.mrb[0].mxu0
        %v2813 = vadd.f32 %v2047, %v2812
        %v2814 = vpop.f32.mrb[0].mxu0
        %v2815 = vadd.f32 %v2051, %v2814
        %v2816 = vpop.f32.mrb[0].mxu0
        %v2817 = vpop.f32.mrb[0].mxu0
        %2818 = vdwg.mxu0
        %2819 = vmatprep.subr.bf16.mxu0 %v2507
        %2820 = vmatpush1.bf16.msra.mxu0 %v2506
        %2821 = vmatprep.subr.bf16.mxu0 %v2511
        %2822 = vmatpush1.bf16.msra.mxu0 %v2510
        %2823 = vmatprep.subr.bf16.mxu0 %v2515
        %2824 = vmatpush1.bf16.msra.mxu0 %v2514
        %2825 = vmatprep.subr.bf16.mxu0 %v2519
        %2826 = vmatpush1.bf16.msra.mxu0 %v2518
        %2827 = vmatprep.subr.bf16.mxu0 %v2523
        %2828 = vmatpush1.bf16.msra.mxu0 %v2522
        %2829 = vmatprep.subr.bf16.mxu0 %v2527
        %2830 = vmatpush1.bf16.msra.mxu0 %v2526
        %2831 = vmatprep.subr.bf16.mxu0 %v2531
        %2832 = vmatpush1.bf16.msra.mxu0 %v2530
        %2833 = vmatprep.subr.bf16.mxu0 %v2535
        %2834 = vmatpush1.bf16.msra.mxu0 %v2534
        %2835 = vmatprep.subr.bf16.mxu0 %v2539
        %2836 = vmatpush1.bf16.msra.mxu0 %v2538
        %2837 = vmatprep.subr.bf16.mxu0 %v2543
        %2838 = vmatpush1.bf16.msra.mxu0 %v2542
        %2839 = vmatprep.subr.bf16.mxu0 %v2547
        %2840 = vmatpush1.bf16.msra.mxu0 %v2546
        %2841 = vmatprep.subr.bf16.mxu0 %v2551
        %2842 = vmatpush1.bf16.msra.mxu0 %v2550
        %2843 = vmatprep.subr.bf16.mxu0 %v2555
        %2844 = vmatpush1.bf16.msra.mxu0 %v2554
        %2845 = vmatprep.subr.bf16.mxu0 %v2559
        %2846 = vmatpush1.bf16.msra.mxu0 %v2558
        %2847 = vmatprep.subr.bf16.mxu0 %v2563
        %2848 = vmatpush1.bf16.msra.mxu0 %v2562
        %2849 = vmatprep.subr.bf16.mxu0 %v2567
        %2850 = vmatpush1.bf16.msra.mxu0 %v2566
        %2851 = vmatprep.mubr.bf16.mxu0 %v1905
        %2852 = vmatmul.mubr.bf16.gmra.mrb[0].mxu0 %v1904
        %v2853 = vpop.f32.mrb[0].mxu0
        %v2854 = vadd.f32 %v2813, %v2853
        %v2855 = vpop.f32.mrb[0].mxu0
        %v2856 = vadd.f32 %v2815, %v2855
        %v2857 = vpop.f32.mrb[0].mxu0
        %v2858 = vpop.f32.mrb[0].mxu0
        %2859 = vdwg.mxu0
        %v2860 = vmax.f32 %v2772, 0.0
        %v2861 = vmax.f32 %v2774, 0.0
        %v2862 = vmax.f32 %v2854, 0.0
        %v2863 = vmax.f32 %v2856, 0.0
        %v2864 = vpack.c.bf16 %v2860, %v2860
        %v2865 = vpack.c.bf16 %v2861, %v2861
        %v2866 = vpack.c.bf16 %v2862, %v2862
        %v2867 = vpack.c.bf16 %v2863, %v2863
        %v2868 = vld [vmem:[#allocation8] sm:$0xf]
        %v2869 = vld [vmem:[#allocation8 + $0x4] sm:$0xf]
        %v2870 = vld [vmem:[#allocation8 + $0x8] sm:$0xf]
        %v2871 = vld [vmem:[#allocation8 + $0xc] sm:$0xf]
        %v2872 = vld [vmem:[#allocation8 + $0x10] sm:$0xf]
        %v2873 = vld [vmem:[#allocation8 + $0x14] sm:$0xf]
        %v2874 = vld [vmem:[#allocation8 + $0x18] sm:$0xf]
        %v2875 = vld [vmem:[#allocation8 + $0x1c] sm:$0xf]
        %v2876 = vld [vmem:[#allocation8 + $0x20] sm:$0xf]
        %v2877 = vld [vmem:[#allocation8 + $0x24] sm:$0xf]
        %v2878 = vld [vmem:[#allocation8 + $0x28] sm:$0xf]
        %v2879 = vld [vmem:[#allocation8 + $0x2c] sm:$0xf]
        %v2880 = vld [vmem:[#allocation8 + $0x30] sm:$0xf]
        %v2881 = vld [vmem:[#allocation8 + $0x34] sm:$0xf]
        %v2882 = vld [vmem:[#allocation8 + $0x38] sm:$0xf]
        %v2883 = vld [vmem:[#allocation8 + $0x3c] sm:$0xf]
        %v2884 = vld [vmem:[#allocation8 + $0x40] sm:$0xf]
        %v2885 = vld [vmem:[#allocation8 + $0x44] sm:$0xf]
        %v2886 = vld [vmem:[#allocation8 + $0x48] sm:$0xf]
        %v2887 = vld [vmem:[#allocation8 + $0x4c] sm:$0xf]
        %v2888 = vld [vmem:[#allocation8 + $0x50] sm:$0xf]
        %v2889 = vld [vmem:[#allocation8 + $0x54] sm:$0xf]
        %v2890 = vld [vmem:[#allocation8 + $0x58] sm:$0xf]
        %v2891 = vld [vmem:[#allocation8 + $0x5c] sm:$0xf]
        %v2892 = vld [vmem:[#allocation8 + $0x60] sm:$0xf]
        %v2893 = vld [vmem:[#allocation8 + $0x64] sm:$0xf]
        %v2894 = vld [vmem:[#allocation8 + $0x68] sm:$0xf]
        %v2895 = vld [vmem:[#allocation8 + $0x6c] sm:$0xf]
        %v2896 = vld [vmem:[#allocation8 + $0x70] sm:$0xf]
        %v2897 = vld [vmem:[#allocation8 + $0x74] sm:$0xf]
        %v2898 = vld [vmem:[#allocation8 + $0x78] sm:$0xf]
        %v2899 = vld [vmem:[#allocation8 + $0x7c] sm:$0xf]
        %v2900 = vld [vmem:[#allocation8 + $0x80] sm:$0xf]
        %v2901 = vld [vmem:[#allocation8 + $0x84] sm:$0xf]
        %v2902 = vld [vmem:[#allocation8 + $0x88] sm:$0xf]
        %v2903 = vld [vmem:[#allocation8 + $0x8c] sm:$0xf]
        %v2904 = vld [vmem:[#allocation8 + $0x90] sm:$0xf]
        %v2905 = vld [vmem:[#allocation8 + $0x94] sm:$0xf]
        %v2906 = vld [vmem:[#allocation8 + $0x98] sm:$0xf]
        %v2907 = vld [vmem:[#allocation8 + $0x9c] sm:$0xf]
        %v2908 = vld [vmem:[#allocation8 + $0xa0] sm:$0xf]
        %v2909 = vld [vmem:[#allocation8 + $0xa4] sm:$0xf]
        %v2910 = vld [vmem:[#allocation8 + $0xa8] sm:$0xf]
        %v2911 = vld [vmem:[#allocation8 + $0xac] sm:$0xf]
        %v2912 = vld [vmem:[#allocation8 + $0xb0] sm:$0xf]
        %v2913 = vld [vmem:[#allocation8 + $0xb4] sm:$0xf]
        %v2914 = vld [vmem:[#allocation8 + $0xb8] sm:$0xf]
        %v2915 = vld [vmem:[#allocation8 + $0xbc] sm:$0xf]
        %v2916 = vld [vmem:[#allocation8 + $0xc0] sm:$0xf]
        %v2917 = vld [vmem:[#allocation8 + $0xc4] sm:$0xf]
        %v2918 = vld [vmem:[#allocation8 + $0xc8] sm:$0xf]
        %v2919 = vld [vmem:[#allocation8 + $0xcc] sm:$0xf]
        %v2920 = vld [vmem:[#allocation8 + $0xd0] sm:$0xf]
        %v2921 = vld [vmem:[#allocation8 + $0xd4] sm:$0xf]
        %v2922 = vld [vmem:[#allocation8 + $0xd8] sm:$0xf]
        %v2923 = vld [vmem:[#allocation8 + $0xdc] sm:$0xf]
        %v2924 = vld [vmem:[#allocation8 + $0xe0] sm:$0xf]
        %v2925 = vld [vmem:[#allocation8 + $0xe4] sm:$0xf]
        %v2926 = vld [vmem:[#allocation8 + $0xe8] sm:$0xf]
        %v2927 = vld [vmem:[#allocation8 + $0xec] sm:$0xf]
        %v2928 = vld [vmem:[#allocation8 + $0xf0] sm:$0xf]
        %v2929 = vld [vmem:[#allocation8 + $0xf4] sm:$0xf]
        %v2930 = vld [vmem:[#allocation8 + $0xf8] sm:$0xf]
        %v2931 = vld [vmem:[#allocation8 + $0xfc] sm:$0xf]
        %v2932 = vld [vmem:[%s6] sm:$0x1]
        %v2934 = vlaneseq
        %v2935 = vshrl.u32 %v2934, 7
        %v2936 = vsub.s32 0, %v2935
        %v2937 = vrot.slane %v2932, %v2936
        %v3003 = vunpack.c.l.b16 %v2868
        %v3004 = vunpack.c.l.b16 %v2869
        %v3005 = vunpack.c.l.b16 %v2870
        %v3006 = vunpack.c.l.b16 %v2871
        %v3007 = vunpack.c.l.b16 %v2872
        %v3008 = vunpack.c.l.b16 %v2873
        %v3009 = vunpack.c.l.b16 %v2874
        %v3010 = vunpack.c.l.b16 %v2875
        %v3011 = vunpack.c.l.b16 %v2876
        %v3012 = vunpack.c.l.b16 %v2877
        %v3013 = vunpack.c.l.b16 %v2878
        %v3014 = vunpack.c.l.b16 %v2879
        %v3015 = vunpack.c.l.b16 %v2880
        %v3016 = vunpack.c.l.b16 %v2881
        %v3017 = vunpack.c.l.b16 %v2882
        %v3018 = vunpack.c.l.b16 %v2883
        %v3019 = vunpack.c.l.b16 %v2884
        %v3020 = vunpack.c.l.b16 %v2885
        %v3021 = vunpack.c.l.b16 %v2886
        %v3022 = vunpack.c.l.b16 %v2887
        %v3023 = vunpack.c.l.b16 %v2888
        %v3024 = vunpack.c.l.b16 %v2889
        %v3025 = vunpack.c.l.b16 %v2890
        %v3026 = vunpack.c.l.b16 %v2891
        %v3027 = vunpack.c.l.b16 %v2892
        %v3028 = vunpack.c.l.b16 %v2893
        %v3029 = vunpack.c.l.b16 %v2894
        %v3030 = vunpack.c.l.b16 %v2895
        %v3031 = vunpack.c.l.b16 %v2896
        %v3032 = vunpack.c.l.b16 %v2897
        %v3033 = vunpack.c.l.b16 %v2898
        %v3034 = vunpack.c.l.b16 %v2899
        %v3035 = vunpack.c.l.b16 %v2900
        %v3036 = vunpack.c.l.b16 %v2901
        %v3037 = vunpack.c.l.b16 %v2902
        %v3038 = vunpack.c.l.b16 %v2903
        %v3039 = vunpack.c.l.b16 %v2904
        %v3040 = vunpack.c.l.b16 %v2905
        %v3041 = vunpack.c.l.b16 %v2906
        %v3042 = vunpack.c.l.b16 %v2907
        %v3043 = vunpack.c.l.b16 %v2908
        %v3044 = vunpack.c.l.b16 %v2909
        %v3045 = vunpack.c.l.b16 %v2910
        %v3046 = vunpack.c.l.b16 %v2911
        %v3047 = vunpack.c.l.b16 %v2912
        %v3048 = vunpack.c.l.b16 %v2913
        %v3049 = vunpack.c.l.b16 %v2914
        %v3050 = vunpack.c.l.b16 %v2915
        %v3051 = vunpack.c.l.b16 %v2916
        %v3052 = vunpack.c.l.b16 %v2917
        %v3053 = vunpack.c.l.b16 %v2918
        %v3054 = vunpack.c.l.b16 %v2919
        %v3055 = vunpack.c.l.b16 %v2920
        %v3056 = vunpack.c.l.b16 %v2921
        %v3057 = vunpack.c.l.b16 %v2922
        %v3058 = vunpack.c.l.b16 %v2923
        %v3059 = vunpack.c.l.b16 %v2924
        %v3060 = vunpack.c.l.b16 %v2925
        %v3061 = vunpack.c.l.b16 %v2926
        %v3062 = vunpack.c.l.b16 %v2927
        %v3063 = vunpack.c.l.b16 %v2928
        %v3064 = vunpack.c.l.b16 %v2929
        %v3065 = vunpack.c.l.b16 %v2930
        %v3066 = vunpack.c.l.b16 %v2931
        %v3067 = vpack.c.b16 %v3004, %v3003
        %v3068 = vpack.c.b16 %v3006, %v3005
        %v3069 = vpack.c.b16 %v3008, %v3007
        %v3070 = vpack.c.b16 %v3010, %v3009
        %v3071 = vpack.c.b16 %v3012, %v3011
        %v3072 = vpack.c.b16 %v3014, %v3013
        %v3073 = vpack.c.b16 %v3016, %v3015
        %v3074 = vpack.c.b16 %v3018, %v3017
        %v3075 = vpack.c.b16 %v3020, %v3019
        %v3076 = vpack.c.b16 %v3022, %v3021
        %v3077 = vpack.c.b16 %v3024, %v3023
        %v3078 = vpack.c.b16 %v3026, %v3025
        %v3079 = vpack.c.b16 %v3028, %v3027
        %v3080 = vpack.c.b16 %v3030, %v3029
        %v3081 = vpack.c.b16 %v3032, %v3031
        %v3082 = vpack.c.b16 %v3034, %v3033
        %v3083 = vpack.c.b16 %v3036, %v3035
        %v3084 = vpack.c.b16 %v3038, %v3037
        %v3085 = vpack.c.b16 %v3040, %v3039
        %v3086 = vpack.c.b16 %v3042, %v3041
        %v3087 = vpack.c.b16 %v3044, %v3043
        %v3088 = vpack.c.b16 %v3046, %v3045
        %v3089 = vpack.c.b16 %v3048, %v3047
        %v3090 = vpack.c.b16 %v3050, %v3049
        %v3091 = vpack.c.b16 %v3052, %v3051
        %v3092 = vpack.c.b16 %v3054, %v3053
        %v3093 = vpack.c.b16 %v3056, %v3055
        %v3094 = vpack.c.b16 %v3058, %v3057
        %v3095 = vpack.c.b16 %v3060, %v3059
        %v3096 = vpack.c.b16 %v3062, %v3061
        %v3097 = vpack.c.b16 %v3064, %v3063
        %v3098 = vpack.c.b16 %v3066, %v3065
        %3131 = vmatprep.subr.bf16.mxu0 0
        %3132 = vmatpush1.bf16.msra.mxu0 %v3067
        %3133 = vmatprep.subr.bf16.mxu0 0
        %3134 = vmatpush1.bf16.msra.mxu0 %v3068
        %3135 = vmatprep.subr.bf16.mxu0 0
        %3136 = vmatpush1.bf16.msra.mxu0 %v3069
        %3137 = vmatprep.subr.bf16.mxu0 0
        %3138 = vmatpush1.bf16.msra.mxu0 %v3070
        %3139 = vmatprep.subr.bf16.mxu0 0
        %3140 = vmatpush1.bf16.msra.mxu0 %v3071
        %3141 = vmatprep.subr.bf16.mxu0 0
        %3142 = vmatpush1.bf16.msra.mxu0 %v3072
        %3143 = vmatprep.subr.bf16.mxu0 0
        %3144 = vmatpush1.bf16.msra.mxu0 %v3073
        %3145 = vmatprep.subr.bf16.mxu0 0
        %3146 = vmatpush1.bf16.msra.mxu0 %v3074
        %3147 = vmatprep.subr.bf16.mxu0 0
        %3148 = vmatpush1.bf16.msra.mxu0 %v3075
        %3149 = vmatprep.subr.bf16.mxu0 0
        %3150 = vmatpush1.bf16.msra.mxu0 %v3076
        %3151 = vmatprep.subr.bf16.mxu0 0
        %3152 = vmatpush1.bf16.msra.mxu0 %v3077
        %3153 = vmatprep.subr.bf16.mxu0 0
        %3154 = vmatpush1.bf16.msra.mxu0 %v3078
        %3155 = vmatprep.subr.bf16.mxu0 0
        %3156 = vmatpush1.bf16.msra.mxu0 %v3079
        %3157 = vmatprep.subr.bf16.mxu0 0
        %3158 = vmatpush1.bf16.msra.mxu0 %v3080
        %3159 = vmatprep.subr.bf16.mxu0 0
        %3160 = vmatpush1.bf16.msra.mxu0 %v3081
        %3161 = vmatprep.subr.bf16.mxu0 0
        %3162 = vmatpush1.bf16.msra.mxu0 %v3082
        %3163 = vmatprep.mubr.bf16.mxu0 %v2865
        %3164 = vmatmul.mubr.bf16.gmra.mrb[0].mxu0 %v2864
        %v3165 = vpop.f32.mrb[0].mxu0
        %v3166 = vadd.f32 %v2937, %v3165
        %v3167 = vpop.f32.mrb[0].mxu0
        %v3168 = vpop.f32.mrb[0].mxu0
        %v3169 = vpop.f32.mrb[0].mxu0
        %3170 = vdwg.mxu0
        %3171 = vmatprep.subr.bf16.mxu0 0
        %3172 = vmatpush1.bf16.msra.mxu0 %v3083
        %3173 = vmatprep.subr.bf16.mxu0 0
        %3174 = vmatpush1.bf16.msra.mxu0 %v3084
        %3175 = vmatprep.subr.bf16.mxu0 0
        %3176 = vmatpush1.bf16.msra.mxu0 %v3085
        %3177 = vmatprep.subr.bf16.mxu0 0
        %3178 = vmatpush1.bf16.msra.mxu0 %v3086
        %3179 = vmatprep.subr.bf16.mxu0 0
        %3180 = vmatpush1.bf16.msra.mxu0 %v3087
        %3181 = vmatprep.subr.bf16.mxu0 0
        %3182 = vmatpush1.bf16.msra.mxu0 %v3088
        %3183 = vmatprep.subr.bf16.mxu0 0
        %3184 = vmatpush1.bf16.msra.mxu0 %v3089
        %3185 = vmatprep.subr.bf16.mxu0 0
        %3186 = vmatpush1.bf16.msra.mxu0 %v3090
        %3187 = vmatprep.subr.bf16.mxu0 0
        %3188 = vmatpush1.bf16.msra.mxu0 %v3091
        %3189 = vmatprep.subr.bf16.mxu0 0
        %3190 = vmatpush1.bf16.msra.mxu0 %v3092
        %3191 = vmatprep.subr.bf16.mxu0 0
        %3192 = vmatpush1.bf16.msra.mxu0 %v3093
        %3193 = vmatprep.subr.bf16.mxu0 0
        %3194 = vmatpush1.bf16.msra.mxu0 %v3094
        %3195 = vmatprep.subr.bf16.mxu0 0
        %3196 = vmatpush1.bf16.msra.mxu0 %v3095
        %3197 = vmatprep.subr.bf16.mxu0 0
        %3198 = vmatpush1.bf16.msra.mxu0 %v3096
        %3199 = vmatprep.subr.bf16.mxu0 0
        %3200 = vmatpush1.bf16.msra.mxu0 %v3097
        %3201 = vmatprep.subr.bf16.mxu0 0
        %3202 = vmatpush1.bf16.msra.mxu0 %v3098
        %3203 = vmatprep.mubr.bf16.mxu0 %v2867
        %3204 = vmatmul.mubr.bf16.gmra.mrb[0].mxu0 %v2866
        %v3205 = vpop.f32.mrb[0].mxu0
        %v3206 = vadd.f32 %v3166, %v3205
        %v3207 = vpop.f32.mrb[0].mxu0
        %v3208 = vpop.f32.mrb[0].mxu0
        %v3209 = vpop.f32.mrb[0].mxu0
        %3210 = vdwg.mxu0
        %3211 = vst [vmem:[%s338] sm:$0xff] %v3206
        %s3212 = sand.u32 %s186, 1
        %s3213 = scalar_lea.sflag [#allocation4], %s3212
        %s3214 = sand.u32 %s186, 1
        %s3215 = smul.addr %s3214, 8
        %s3216 = scalar_lea.vmem [#allocation10], %s3215
        // Predicated region
        $region65: #{tpu_custom_call.1} parent=47 // pred_check
          %p3217 = pneg %p196
        $region66: #{tpu_custom_call.1} parent=47 // pred_check_branch
          %3219 = sbr.rel (%p3217) target = $region68
        $region67: #{tpu_custom_call.1} parent=47 // pred_region
          %s3221 = ssub.s32 128, 128
          %3222 = vsyncadd %s3213, %s3221
          %s3223 = smul.addr %s26, 128
          %s3224 = scalar_lea.hbm %s7, %s3223
          %s3226 = sshll.u32 %s3216, 4
          %s3227 = int_to_ptr.vmem [resolvable:$true] %s3226
          %3229 = dma.vmem_to_hbm [thread:$0]  %s3227, 128, %s3224, %s3213
        $region68: #{tpu_custom_call.1} parent=47 // pred_fallthru
          _
      $region48: #{tpu_custom_call.1} parent=5 // pred_fallthru
        _
      %p3230 = scmp.le.s32.totalorder 2, %s21
      // Predicated region
      $region69: #{tpu_custom_call.1} parent=5 // pred_check
        %p3231 = pneg %p3230
      $region70: #{tpu_custom_call.1} parent=5 // pred_check_branch
        %3233 = sbr.rel (%p3231) target = $region72
      $region71: #{tpu_custom_call.1} parent=5 // pred_region
        %s3234 = ssub.s32 %s21, 2
        // Predicated region
        $region73: #{tpu_custom_call.1} parent=71 // pred_check
          %p3235 = pneg %p202
        $region74: #{tpu_custom_call.1} parent=71 // pred_check_branch
          %3237 = sbr.rel (%p3235) target = $region76
        $region75: #{tpu_custom_call.1} parent=71 // pred_region
          %s3238 = sand.u32 %s187, 1
          %s3239 = scalar_lea.sflag [#allocation4], %s3238
          %s3240 = sand.u32 %s187, 1
          %s3241 = smul.addr %s3240, 8
          %s3242 = scalar_lea.vmem [#allocation10], %s3241
          %3243 = dma.done %s3239, 128
        $region76: #{tpu_custom_call.1} parent=71 // pred_fallthru
          _
      $region72: #{tpu_custom_call.1} parent=5 // pred_fallthru
        _
    $region6: #{tpu_custom_call.1} parent=1 // loop_footer
      %s25 = sadd.s32 1, %s21
    $region7: #{tpu_custom_call.1} parent=1 // loop_footer_branch
      %20 = sbr.rel target = $region3
    $region8: #{tpu_custom_call.1} parent=1 // loop_exit
      _
    %3244 = vsyncpa [#allocation3], 1
    %s3245 = scalar_lea.sflag [#allocation3], 1
    %3246 = vsyncpa %s3245, 1
    %3247 = vsyncpa [#allocation6], 1
    %3248 = vsyncpa [#allocation9], 1
    %3249 = vsyncpa [#allocation4], 1
    %s3250 = scalar_lea.sflag [#allocation4], 1
    %3251 = vsyncpa %s3250, 1

</llo_original>
